<compile_context>
chip_gen: v7x
topology: tpu7x:2x2x1
jax: 0.10.0
libtpu: 0.0.40
codegen_flags: <defaults>
</compile_context>

<pallas_src>
import jax
import jax.numpy as jnp
from jax.experimental import pallas as pl
from jax.experimental.pallas import tpu as pltpu

LANE = 128        # TPU lane width (batch rides this axis).
SUBLANE = 8
TILE_N_MAX = 1024 # big batch tile to amortize per-grid-step overhead.

H1, H2, H3, OUT = 512, 512, 32, 2
OUT_PAD = 16      # logits padded 2 -> 16 sublanes (bf16 sublane packing).


def _round_up(n, m):
    return ((n + m - 1) // m) * m


def _pick_tile_n(n_pad):
    """Largest tile in {1024,512,256,128} that divides n_pad while leaving >=2
    grid steps (so the v7x megacore has work on both cores); else one tile."""
    for cand in (TILE_N_MAX, 512, 256, 128):
        if cand < n_pad and n_pad % cand == 0:
            return cand
    return n_pad


def birbvae_kernel(x_ref,
                   w1_ref, b1_ref,
                   w2_ref, b2_ref,
                   w3_ref, b3_ref,
                   w4_ref, b4_ref,
                   out_ref):
    """One (feature, TILE_N) batch tile per grid step.  Params have constant
    index_maps, so they are fetched once and stay resident in VMEM."""
    xt = x_ref[...]                                    # bf16 (d_pad, TILE_N)

    # Linear(input, 512) + ReLU.  bf16 MXU, f32 accumulate; bias/ReLU/cast as
    # one expression so the epilogue fuses per result vreg.
    h = jnp.maximum(
        jnp.dot(w1_ref[...], xt, preferred_element_type=jnp.float32)
        + b1_ref[...], 0.0).astype(jnp.bfloat16)       # (512, TILE_N)

    # Linear(512, 512) + ReLU
    h = jnp.maximum(
        jnp.dot(w2_ref[...], h, preferred_element_type=jnp.float32)
        + b2_ref[...], 0.0).astype(jnp.bfloat16)       # (512, TILE_N)

    # Linear(512, 32) + ReLU (no lane padding needed: 32 lives on sublanes)
    h = jnp.maximum(
        jnp.dot(w3_ref[...], h, preferred_element_type=jnp.float32)
        + b3_ref[...], 0.0).astype(jnp.bfloat16)       # (32, TILE_N)

    # Linear(32, 2->16 padded), no activation.  Padded rows 2..15 stay zero.
    out_ref[...] = (
        jnp.dot(w4_ref[...], h, preferred_element_type=jnp.float32)
        + b4_ref[...])                                 # f32 (16, TILE_N)


def birbvae_forward(x, packed):
    """x: (N, input_size) f32.  packed: bf16 (out,in) weights, f32 (out,1) biases."""
    n, d_in = x.shape
    d_pad = packed["w1"].shape[1]           # input dim padded to a lane multiple

    n_pad = _round_up(max(n, 1), LANE)      # batch is the lane axis now
    tile_n = _pick_tile_n(n_pad)
    grid = (n_pad // tile_n,)

    # Transposed, zero-padded, bf16 input: features on sublanes, batch on lanes.
    xt = jnp.zeros((d_pad, n_pad), jnp.bfloat16)
    xt = xt.at[:d_in, :n].set(x.T.astype(jnp.bfloat16))

    args = (xt,
            packed["w1"], packed["b1"],
            packed["w2"], packed["b2"],
            packed["w3"], packed["b3"],
            packed["w4"], packed["b4"])

    in_specs = [pl.BlockSpec((d_pad, tile_n), lambda i: (0, i))]   # x: tiled
    for a in args[1:]:                                             # params: resident
        in_specs.append(pl.BlockSpec(a.shape, lambda i: (0, 0)))

    flops = 2 * n_pad * (d_pad * H1 + H1 * H2 + H2 * H3 + H3 * OUT_PAD)
    bytes_accessed = (sum(int(a.size) * a.dtype.itemsize for a in args)
                      + n_pad * OUT_PAD * 4)

    out_t = pl.pallas_call(
        birbvae_kernel,
        out_shape=jax.ShapeDtypeStruct((OUT_PAD, n_pad), jnp.float32),
        grid=grid,
        in_specs=in_specs,
        out_specs=pl.BlockSpec((OUT_PAD, tile_n), lambda i: (0, i)),
        compiler_params=pltpu.CompilerParams(
            dimension_semantics=("parallel",),
            vmem_limit_bytes=32 * 1024 * 1024),
        cost_estimate=pl.CostEstimate(
            flops=flops, transcendentals=0, bytes_accessed=bytes_accessed),
    )(*args)

    return out_t[:OUT, :n].T


def init_params(key, input_size):
    """f32 params in nn.Linear orientation: W (out, in), b (out,)."""
    dims = [(input_size, H1), (H1, H2), (H2, H3), (H3, OUT)]
    params = {}
    for i, (d_in, d_out) in enumerate(dims, start=1):
        key, kw, kb = jax.random.split(key, 3)
        bound = 1.0 / float(d_in) ** 0.5
        params[f"w{i}"] = jax.random.uniform(
            kw, (d_out, d_in), jnp.float32, minval=-bound, maxval=bound)
        params[f"b{i}"] = jax.random.uniform(
            kb, (d_out,), jnp.float32, minval=-bound, maxval=bound)
    return params


def pack_params(params, input_size):
    """Kernel layout: bf16 (out,in) weights (layer-1 in-dim padded to 128,
    final out-dim padded 2->16), f32 (out,1) bias columns."""
    d_pad = _round_up(input_size, LANE)

    def pad2(a, rows, cols):
        z = jnp.zeros((rows, cols), a.dtype)
        return z.at[:a.shape[0], :a.shape[1]].set(a)

    return {
        "w1": pad2(params["w1"], H1, d_pad).astype(jnp.bfloat16),
        "b1": params["b1"][:, None],
        "w2": params["w2"].astype(jnp.bfloat16),
        "b2": params["b2"][:, None],
        "w3": params["w3"].astype(jnp.bfloat16),
        "b3": params["b3"][:, None],
        "w4": pad2(params["w4"], OUT_PAD, H3).astype(jnp.bfloat16),
        "b4": pad2(params["b4"][:, None], OUT_PAD, 1),
    }


def reference_forward(x, packed):
    """Plain-JAX reference with the SAME quantization as the kernel:
    bf16 input/weights/inter-layer activations, f32 accumulate + bias."""
    n, d_in = x.shape
    d_pad = packed["w1"].shape[1]
    h = jnp.zeros((d_pad, n), jnp.bfloat16).at[:d_in, :].set(
        x.T.astype(jnp.bfloat16))
    for i in (1, 2, 3):
        h = jnp.maximum(
            jnp.dot(packed[f"w{i}"], h, preferred_element_type=jnp.float32)
            + packed[f"b{i}"], 0.0).astype(jnp.bfloat16)
    out = (jnp.dot(packed["w4"], h, preferred_element_type=jnp.float32)
           + packed["b4"])
    return out[:OUT, :].T


if __name__ == "__main__":
    key = jax.random.PRNGKey(0)
    input_size = 64
    batch = 8

    kp, kx = jax.random.split(key)
    params = init_params(kp, input_size)
    packed = pack_params(params, input_size)
    x = jax.random.normal(kx, (batch, input_size), jnp.float32)

    out = birbvae_forward(x, packed)
    out = jax.block_until_ready(out)

    ref = reference_forward(x, packed)
    assert out.shape == (batch, OUT), out.shape
    max_err = jnp.max(jnp.abs(out - ref))
    assert jnp.allclose(out, ref, atol=2e-2, rtol=2e-2), (
        f"max abs err = {max_err}")

    print("KERNEL_OK")
</pallas_src>

<mosaic_0001>
module attributes {stable_mosaic.version = 11 : i64} {
  func.func @birbvae_kernel(%arg0: i32, %arg1: memref<128x128xbf16, #tpu.memory_space<vmem>>, %arg2: memref<512x128xbf16, #tpu.memory_space<vmem>>, %arg3: memref<512x1xf32, #tpu.memory_space<vmem>>, %arg4: memref<512x512xbf16, #tpu.memory_space<vmem>>, %arg5: memref<512x1xf32, #tpu.memory_space<vmem>>, %arg6: memref<32x512xbf16, #tpu.memory_space<vmem>>, %arg7: memref<32x1xf32, #tpu.memory_space<vmem>>, %arg8: memref<16x32xbf16, #tpu.memory_space<vmem>>, %arg9: memref<16x1xf32, #tpu.memory_space<vmem>>, %arg10: memref<16x128xf32, #tpu.memory_space<vmem>>) attributes {dimension_semantics = [#tpu.dimension_semantics<parallel>], iteration_bounds = array<i64: 1>, scalar_prefetch = 0 : i64, scratch_operands = 0 : i64, tpu.core_type = #tpu.core_type<tc>, window_params = [{transform_indices = @transform_0, window_bounds = array<i64: 128, 128>}, {pipeline_mode = #tpu.pipeline_mode<synchronous>, transform_indices = @transform_1, window_bounds = array<i64: 512, 128>}, {pipeline_mode = #tpu.pipeline_mode<synchronous>, transform_indices = @transform_2, window_bounds = array<i64: 512, 1>}, {pipeline_mode = #tpu.pipeline_mode<synchronous>, transform_indices = @transform_3, window_bounds = array<i64: 512, 512>}, {pipeline_mode = #tpu.pipeline_mode<synchronous>, transform_indices = @transform_4, window_bounds = array<i64: 512, 1>}, {pipeline_mode = #tpu.pipeline_mode<synchronous>, transform_indices = @transform_5, window_bounds = array<i64: 32, 512>}, {pipeline_mode = #tpu.pipeline_mode<synchronous>, transform_indices = @transform_6, window_bounds = array<i64: 32, 1>}, {pipeline_mode = #tpu.pipeline_mode<synchronous>, transform_indices = @transform_7, window_bounds = array<i64: 16, 32>}, {pipeline_mode = #tpu.pipeline_mode<synchronous>, transform_indices = @transform_8, window_bounds = array<i64: 16, 1>}, {transform_indices = @transform_9, window_bounds = array<i64: 16, 128>}]} {
    %c0 = arith.constant 0 : index
    %c0_0 = arith.constant 0 : index
    %0 = vector.load %arg1[%c0, %c0_0] : memref<128x128xbf16, #tpu.memory_space<vmem>>, vector<128x128xbf16>
    %c0_1 = arith.constant 0 : index
    %c0_2 = arith.constant 0 : index
    %1 = vector.load %arg2[%c0_1, %c0_2] : memref<512x128xbf16, #tpu.memory_space<vmem>>, vector<512x128xbf16>
    %cst = arith.constant dense<0.000000e+00> : vector<512x128xf32>
    %2 = tpu.matmul %1, %0, %cst {dimension_numbers = #tpu.dot_dimension_numbers<[1], [0], [0], [1], [0, 0, 1, 1], [], []>} : vector<512x128xbf16>, vector<128x128xbf16>, vector<512x128xf32> -> vector<512x128xf32>
    %c0_3 = arith.constant 0 : index
    %c0_4 = arith.constant 0 : index
    %3 = vector.load %arg3[%c0_3, %c0_4] : memref<512x1xf32, #tpu.memory_space<vmem>>, vector<512x1xf32>
    %4 = vector.broadcast %3 : vector<512x1xf32> to vector<512x128xf32>
    %5 = arith.addf %2, %4 : vector<512x128xf32>
    %cst_5 = arith.constant 0.000000e+00 : f32
    %6 = vector.broadcast %cst_5 : f32 to vector<512x128xf32>
    %7 = arith.maximumf %5, %6 : vector<512x128xf32>
    %8 = arith.truncf %7 : vector<512x128xf32> to vector<512x128xbf16>
    %c0_6 = arith.constant 0 : index
    %c0_7 = arith.constant 0 : index
    %9 = vector.load %arg4[%c0_6, %c0_7] : memref<512x512xbf16, #tpu.memory_space<vmem>>, vector<512x512xbf16>
    %cst_8 = arith.constant dense<0.000000e+00> : vector<512x128xf32>
    %10 = tpu.matmul %9, %8, %cst_8 {dimension_numbers = #tpu.dot_dimension_numbers<[1], [0], [0], [1], [0, 0, 1, 1], [], []>} : vector<512x512xbf16>, vector<512x128xbf16>, vector<512x128xf32> -> vector<512x128xf32>
    %c0_9 = arith.constant 0 : index
    %c0_10 = arith.constant 0 : index
    %11 = vector.load %arg5[%c0_9, %c0_10] : memref<512x1xf32, #tpu.memory_space<vmem>>, vector<512x1xf32>
    %12 = vector.broadcast %11 : vector<512x1xf32> to vector<512x128xf32>
    %13 = arith.addf %10, %12 : vector<512x128xf32>
    %cst_11 = arith.constant 0.000000e+00 : f32
    %14 = vector.broadcast %cst_11 : f32 to vector<512x128xf32>
    %15 = arith.maximumf %13, %14 : vector<512x128xf32>
    %16 = arith.truncf %15 : vector<512x128xf32> to vector<512x128xbf16>
    %c0_12 = arith.constant 0 : index
    %c0_13 = arith.constant 0 : index
    %17 = vector.load %arg6[%c0_12, %c0_13] : memref<32x512xbf16, #tpu.memory_space<vmem>>, vector<32x512xbf16>
    %cst_14 = arith.constant dense<0.000000e+00> : vector<32x128xf32>
    %18 = tpu.matmul %17, %16, %cst_14 {dimension_numbers = #tpu.dot_dimension_numbers<[1], [0], [0], [1], [0, 0, 1, 1], [], []>} : vector<32x512xbf16>, vector<512x128xbf16>, vector<32x128xf32> -> vector<32x128xf32>
    %c0_15 = arith.constant 0 : index
    %c0_16 = arith.constant 0 : index
    %19 = vector.load %arg7[%c0_15, %c0_16] : memref<32x1xf32, #tpu.memory_space<vmem>>, vector<32x1xf32>
    %20 = vector.broadcast %19 : vector<32x1xf32> to vector<32x128xf32>
    %21 = arith.addf %18, %20 : vector<32x128xf32>
    %cst_17 = arith.constant 0.000000e+00 : f32
    %22 = vector.broadcast %cst_17 : f32 to vector<32x128xf32>
    %23 = arith.maximumf %21, %22 : vector<32x128xf32>
    %24 = arith.truncf %23 : vector<32x128xf32> to vector<32x128xbf16>
    %c0_18 = arith.constant 0 : index
    %c0_19 = arith.constant 0 : index
    %25 = vector.load %arg8[%c0_18, %c0_19] : memref<16x32xbf16, #tpu.memory_space<vmem>>, vector<16x32xbf16>
    %cst_20 = arith.constant dense<0.000000e+00> : vector<16x128xf32>
    %26 = tpu.matmul %25, %24, %cst_20 {dimension_numbers = #tpu.dot_dimension_numbers<[1], [0], [0], [1], [0, 0, 1, 1], [], []>} : vector<16x32xbf16>, vector<32x128xbf16>, vector<16x128xf32> -> vector<16x128xf32>
    %c0_21 = arith.constant 0 : index
    %c0_22 = arith.constant 0 : index
    %27 = vector.load %arg9[%c0_21, %c0_22] : memref<16x1xf32, #tpu.memory_space<vmem>>, vector<16x1xf32>
    %28 = vector.broadcast %27 : vector<16x1xf32> to vector<16x128xf32>
    %29 = arith.addf %26, %28 : vector<16x128xf32>
    %c0_23 = arith.constant 0 : index
    %c0_24 = arith.constant 0 : index
    %30 = vector.load %arg10[%c0_23, %c0_24] : memref<16x128xf32, #tpu.memory_space<vmem>>, vector<16x128xf32>
    tpu.vector_store %arg10[%c0_23, %c0_24], %29 {strides = array<i32>} : memref<16x128xf32, #tpu.memory_space<vmem>>, vector<16x128xf32>,
    return
  }
  func.func @transform_0(%arg0: i32) -> (i32, i32) {
    %c0_i32 = arith.constant 0 : i32
    %c0_i32_0 = arith.constant 0 : i32
    return %c0_i32, %arg0 : i32, i32
  }
  func.func @transform_1(%arg0: i32) -> (i32, i32) {
    %c0_i32 = arith.constant 0 : i32
    %c0_i32_0 = arith.constant 0 : i32
    %c0_i32_1 = arith.constant 0 : i32
    return %c0_i32, %c0_i32_0 : i32, i32
  }
  func.func @transform_2(%arg0: i32) -> (i32, i32) {
    %c0_i32 = arith.constant 0 : i32
    %c0_i32_0 = arith.constant 0 : i32
    %c0_i32_1 = arith.constant 0 : i32
    return %c0_i32, %c0_i32_0 : i32, i32
  }
  func.func @transform_3(%arg0: i32) -> (i32, i32) {
    %c0_i32 = arith.constant 0 : i32
    %c0_i32_0 = arith.constant 0 : i32
    %c0_i32_1 = arith.constant 0 : i32
    return %c0_i32, %c0_i32_0 : i32, i32
  }
  func.func @transform_4(%arg0: i32) -> (i32, i32) {
    %c0_i32 = arith.constant 0 : i32
    %c0_i32_0 = arith.constant 0 : i32
    %c0_i32_1 = arith.constant 0 : i32
    return %c0_i32, %c0_i32_0 : i32, i32
  }
  func.func @transform_5(%arg0: i32) -> (i32, i32) {
    %c0_i32 = arith.constant 0 : i32
    %c0_i32_0 = arith.constant 0 : i32
    %c0_i32_1 = arith.constant 0 : i32
    return %c0_i32, %c0_i32_0 : i32, i32
  }
  func.func @transform_6(%arg0: i32) -> (i32, i32) {
    %c0_i32 = arith.constant 0 : i32
    %c0_i32_0 = arith.constant 0 : i32
    %c0_i32_1 = arith.constant 0 : i32
    return %c0_i32, %c0_i32_0 : i32, i32
  }
  func.func @transform_7(%arg0: i32) -> (i32, i32) {
    %c0_i32 = arith.constant 0 : i32
    %c0_i32_0 = arith.constant 0 : i32
    %c0_i32_1 = arith.constant 0 : i32
    return %c0_i32, %c0_i32_0 : i32, i32
  }
  func.func @transform_8(%arg0: i32) -> (i32, i32) {
    %c0_i32 = arith.constant 0 : i32
    %c0_i32_0 = arith.constant 0 : i32
    %c0_i32_1 = arith.constant 0 : i32
    return %c0_i32, %c0_i32_0 : i32, i32
  }
  func.func @transform_9(%arg0: i32) -> (i32, i32) {
    %c0_i32 = arith.constant 0 : i32
    %c0_i32_0 = arith.constant 0 : i32
    return %c0_i32, %arg0 : i32, i32
  }
}

</mosaic_0001>

<llo_original>
// kernel: tpu_custom_call.1
$region0: #{tpu_custom_call.1}
  #allocation0 [shape = 'u32[]', space=smem, size = 0x4, offset = 0x4, fixed_abs, tag = 'smem constant byte address 0x4 - core index']
  #allocation1 [shape = 'u32[144,128]{1,0:T(1,128)}', space=vmem, size = 0x12000, scoped, tag = 'internal scratch']
  %s0 = inlined_call_operand.vmem [shape: bf16[128,128], index: 0, kind: input, shape index: {}]
  %s1 = inlined_call_operand.hbm [shape: bf16[512,128], index: 1, kind: input, shape index: {}]
  %s2 = inlined_call_operand.vmem [shape: f32[512,1], index: 2, kind: input, shape index: {}]
  %s3 = inlined_call_operand.vmem [shape: bf16[512,512], index: 3, kind: input, shape index: {}]
  %s4 = inlined_call_operand.vmem [shape: f32[512,1], index: 4, kind: input, shape index: {}]
  %s5 = inlined_call_operand.hbm [shape: bf16[32,512], index: 5, kind: input, shape index: {}]
  %s6 = inlined_call_operand.vmem [shape: f32[32,1], index: 6, kind: input, shape index: {}]
  %s7 = inlined_call_operand.vmem [shape: bf16[16,32], index: 7, kind: input, shape index: {}]
  %s8 = inlined_call_operand.vmem [shape: f32[16,1], index: 8, kind: input, shape index: {}]
  %s9 = inlined_call_operand.hbm [shape: f32[16,128], index: 9, kind: output, shape index: {}]
  %s10 = sld [smem:[#allocation0]]
  $region54: #{tpu_custom_call.1} parent=0
    _
  %s12 = ssub.s32 1, %s10
  %s13 = scalar_select 0, %s12, %s10
  $region1: #{tpu_custom_call.1} parent=0
    #allocation2 [shape = 'u8[131072]{0}', space=vmem, size = 0x20000, scoped, tag = 'input window, operand 1, single buffered']
    #allocation3 [shape = 's32[1]{0}', space=sflag, size = 0x4, scoped, tag = 'scoped memory for tpu_custom_call.1']
    #allocation4 [shape = 's32[1]{0}', space=sflag, size = 0x4, scoped, tag = 'scoped memory for tpu_custom_call.1']
    #allocation5 [shape = 'u8[32768]{0}', space=vmem, size = 0x8000, scoped, tag = 'input window, operand 5, single buffered']
    #allocation6 [shape = 's32[1]{0}', space=sflag, size = 0x4, scoped, tag = 'scoped memory for tpu_custom_call.1']
    #allocation7 [shape = 'u8[8192]{0}', space=vmem, size = 0x2000, scoped, tag = 'output window, operand 0, single buffered']
    %14 = vsyncpa [#allocation3], 0
    %15 = vsyncpa [#allocation6], 0
    %16 = vsyncpa [#allocation4], 0
    // Predicated region
    $region2: #{tpu_custom_call.1} parent=1 // pred_check
      _
    $region3: #{tpu_custom_call.1} parent=1 // pred_check_branch
      %18 = sbr.rel (0) target = $region5
    $region4: #{tpu_custom_call.1} parent=1 // pred_region
      _
    $region5: #{tpu_custom_call.1} parent=1 // pred_fallthru
      _
    // Predicated region
    $region6: #{tpu_custom_call.1} parent=1 // pred_check
      _
    $region7: #{tpu_custom_call.1} parent=1 // pred_check_branch
      %20 = sbr.rel (0) target = $region9
    $region8: #{tpu_custom_call.1} parent=1 // pred_region
      %s22 = ssub.s32 4096, 4096
      %23 = vsyncadd [#allocation3], %s22
      %s24 = sshll.u32 [#allocation2], 4
      %s25 = int_to_ptr.vmem [resolvable:$true] %s24
      %30 = dma.hbm_to_vmem [thread:$0]  %s1, 4096, %s25, [#allocation3], 64, 64, 4
    $region9: #{tpu_custom_call.1} parent=1 // pred_fallthru
      _
    // Predicated region
    $region10: #{tpu_custom_call.1} parent=1 // pred_check
      _
    $region11: #{tpu_custom_call.1} parent=1 // pred_check_branch
      %32 = sbr.rel (0) target = $region13
    $region12: #{tpu_custom_call.1} parent=1 // pred_region
      _
    $region13: #{tpu_custom_call.1} parent=1 // pred_fallthru
      _
    // Predicated region
    $region14: #{tpu_custom_call.1} parent=1 // pred_check
      _
    $region15: #{tpu_custom_call.1} parent=1 // pred_check_branch
      %34 = sbr.rel (0) target = $region17
    $region16: #{tpu_custom_call.1} parent=1 // pred_region
      _
    $region17: #{tpu_custom_call.1} parent=1 // pred_fallthru
      _
    // Predicated region
    $region18: #{tpu_custom_call.1} parent=1 // pred_check
      _
    $region19: #{tpu_custom_call.1} parent=1 // pred_check_branch
      %36 = sbr.rel (0) target = $region21
    $region20: #{tpu_custom_call.1} parent=1 // pred_region
      _
    $region21: #{tpu_custom_call.1} parent=1 // pred_fallthru
      _
    // Predicated region
    $region22: #{tpu_custom_call.1} parent=1 // pred_check
      _
    $region23: #{tpu_custom_call.1} parent=1 // pred_check_branch
      %38 = sbr.rel (0) target = $region25
    $region24: #{tpu_custom_call.1} parent=1 // pred_region
      %s40 = ssub.s32 1024, 1024
      %41 = vsyncadd [#allocation6], %s40
      %s42 = sshll.u32 [#allocation5], 4
      %s43 = int_to_ptr.vmem [resolvable:$true] %s42
      %48 = dma.hbm_to_vmem [thread:$0]  %s5, 1024, %s43, [#allocation6], 256, 256, 16
    $region25: #{tpu_custom_call.1} parent=1 // pred_fallthru
      _
    // Predicated region
    $region26: #{tpu_custom_call.1} parent=1 // pred_check
      _
    $region27: #{tpu_custom_call.1} parent=1 // pred_check_branch
      %50 = sbr.rel (0) target = $region29
    $region28: #{tpu_custom_call.1} parent=1 // pred_region
      _
    $region29: #{tpu_custom_call.1} parent=1 // pred_fallthru
      _
    // Predicated region
    $region30: #{tpu_custom_call.1} parent=1 // pred_check
      _
    $region31: #{tpu_custom_call.1} parent=1 // pred_check_branch
      %52 = sbr.rel (0) target = $region33
    $region32: #{tpu_custom_call.1} parent=1 // pred_region
      _
    $region33: #{tpu_custom_call.1} parent=1 // pred_fallthru
      _
    // Predicated region
    $region34: #{tpu_custom_call.1} parent=1 // pred_check
      _
    $region35: #{tpu_custom_call.1} parent=1 // pred_check_branch
      %54 = sbr.rel (0) target = $region37
    $region36: #{tpu_custom_call.1} parent=1 // pred_region
      _
    $region37: #{tpu_custom_call.1} parent=1 // pred_fallthru
      _
    // Predicated region
    $region38: #{tpu_custom_call.1} parent=1 // pred_check
      _
    $region39: #{tpu_custom_call.1} parent=1 // pred_check_branch
      %56 = sbr.rel (0) target = $region41
    $region40: #{tpu_custom_call.1} parent=1 // pred_region
      %57 = dma.done [#allocation3], 4096
    $region41: #{tpu_custom_call.1} parent=1 // pred_fallthru
      _
    // Predicated region
    $region42: #{tpu_custom_call.1} parent=1 // pred_check
      _
    $region43: #{tpu_custom_call.1} parent=1 // pred_check_branch
      %59 = sbr.rel (0) target = $region45
    $region44: #{tpu_custom_call.1} parent=1 // pred_region
      %60 = dma.done [#allocation6], 1024
    $region45: #{tpu_custom_call.1} parent=1 // pred_fallthru
      _
    %v62 = vld [vmem:[%s0] sm:$0xf]
    %v63 = vld [vmem:[%s0 + $0x4] sm:$0xf]
    %v64 = vld [vmem:[%s0 + $0x8] sm:$0xf]
    %v65 = vld [vmem:[%s0 + $0xc] sm:$0xf]
    %v66 = vld [vmem:[%s0 + $0x10] sm:$0xf]
    %v67 = vld [vmem:[%s0 + $0x14] sm:$0xf]
    %v68 = vld [vmem:[%s0 + $0x18] sm:$0xf]
    %v69 = vld [vmem:[%s0 + $0x1c] sm:$0xf]
    %v70 = vld [vmem:[%s0 + $0x20] sm:$0xf]
    %v71 = vld [vmem:[%s0 + $0x24] sm:$0xf]
    %v72 = vld [vmem:[%s0 + $0x28] sm:$0xf]
    %v73 = vld [vmem:[%s0 + $0x2c] sm:$0xf]
    %v74 = vld [vmem:[%s0 + $0x30] sm:$0xf]
    %v75 = vld [vmem:[%s0 + $0x34] sm:$0xf]
    %v76 = vld [vmem:[%s0 + $0x38] sm:$0xf]
    %v77 = vld [vmem:[%s0 + $0x3c] sm:$0xf]
    %v78 = vld [vmem:[#allocation2] sm:$0xf]
    %v79 = vld [vmem:[#allocation2 + $0x4] sm:$0xf]
    %v80 = vld [vmem:[#allocation2 + $0x8] sm:$0xf]
    %v81 = vld [vmem:[#allocation2 + $0xc] sm:$0xf]
    %v82 = vld [vmem:[#allocation2 + $0x10] sm:$0xf]
    %v83 = vld [vmem:[#allocation2 + $0x14] sm:$0xf]
    %v84 = vld [vmem:[#allocation2 + $0x18] sm:$0xf]
    %v85 = vld [vmem:[#allocation2 + $0x1c] sm:$0xf]
    %v86 = vld [vmem:[#allocation2 + $0x20] sm:$0xf]
    %v87 = vld [vmem:[#allocation2 + $0x24] sm:$0xf]
    %v88 = vld [vmem:[#allocation2 + $0x28] sm:$0xf]
    %v89 = vld [vmem:[#allocation2 + $0x2c] sm:$0xf]
    %v90 = vld [vmem:[#allocation2 + $0x30] sm:$0xf]
    %v91 = vld [vmem:[#allocation2 + $0x34] sm:$0xf]
    %v92 = vld [vmem:[#allocation2 + $0x38] sm:$0xf]
    %v93 = vld [vmem:[#allocation2 + $0x3c] sm:$0xf]
    %v94 = vld [vmem:[#allocation2 + $0x40] sm:$0xf]
    %v95 = vld [vmem:[#allocation2 + $0x44] sm:$0xf]
    %v96 = vld [vmem:[#allocation2 + $0x48] sm:$0xf]
    %v97 = vld [vmem:[#allocation2 + $0x4c] sm:$0xf]
    %v98 = vld [vmem:[#allocation2 + $0x50] sm:$0xf]
    %v99 = vld [vmem:[#allocation2 + $0x54] sm:$0xf]
    %v100 = vld [vmem:[#allocation2 + $0x58] sm:$0xf]
    %v101 = vld [vmem:[#allocation2 + $0x5c] sm:$0xf]
    %v102 = vld [vmem:[#allocation2 + $0x60] sm:$0xf]
    %v103 = vld [vmem:[#allocation2 + $0x64] sm:$0xf]
    %v104 = vld [vmem:[#allocation2 + $0x68] sm:$0xf]
    %v105 = vld [vmem:[#allocation2 + $0x6c] sm:$0xf]
    %v106 = vld [vmem:[#allocation2 + $0x70] sm:$0xf]
    %v107 = vld [vmem:[#allocation2 + $0x74] sm:$0xf]
    %v108 = vld [vmem:[#allocation2 + $0x78] sm:$0xf]
    %v109 = vld [vmem:[#allocation2 + $0x7c] sm:$0xf]
    %v110 = vld [vmem:[#allocation2 + $0x80] sm:$0xf]
    %v111 = vld [vmem:[#allocation2 + $0x84] sm:$0xf]
    %v112 = vld [vmem:[#allocation2 + $0x88] sm:$0xf]
    %v113 = vld [vmem:[#allocation2 + $0x8c] sm:$0xf]
    %v114 = vld [vmem:[#allocation2 + $0x90] sm:$0xf]
    %v115 = vld [vmem:[#allocation2 + $0x94] sm:$0xf]
    %v116 = vld [vmem:[#allocation2 + $0x98] sm:$0xf]
    %v117 = vld [vmem:[#allocation2 + $0x9c] sm:$0xf]
    %v118 = vld [vmem:[#allocation2 + $0xa0] sm:$0xf]
    %v119 = vld [vmem:[#allocation2 + $0xa4] sm:$0xf]
    %v120 = vld [vmem:[#allocation2 + $0xa8] sm:$0xf]
    %v121 = vld [vmem:[#allocation2 + $0xac] sm:$0xf]
    %v122 = vld [vmem:[#allocation2 + $0xb0] sm:$0xf]
    %v123 = vld [vmem:[#allocation2 + $0xb4] sm:$0xf]
    %v124 = vld [vmem:[#allocation2 + $0xb8] sm:$0xf]
    %v125 = vld [vmem:[#allocation2 + $0xbc] sm:$0xf]
    %v126 = vld [vmem:[#allocation2 + $0xc0] sm:$0xf]
    %v127 = vld [vmem:[#allocation2 + $0xc4] sm:$0xf]
    %v128 = vld [vmem:[#allocation2 + $0xc8] sm:$0xf]
    %v129 = vld [vmem:[#allocation2 + $0xcc] sm:$0xf]
    %v130 = vld [vmem:[#allocation2 + $0xd0] sm:$0xf]
    %v131 = vld [vmem:[#allocation2 + $0xd4] sm:$0xf]
    %v132 = vld [vmem:[#allocation2 + $0xd8] sm:$0xf]
    %v133 = vld [vmem:[#allocation2 + $0xdc] sm:$0xf]
    %v134 = vld [vmem:[#allocation2 + $0xe0] sm:$0xf]
    %v135 = vld [vmem:[#allocation2 + $0xe4] sm:$0xf]
    %v136 = vld [vmem:[#allocation2 + $0xe8] sm:$0xf]
    %v137 = vld [vmem:[#allocation2 + $0xec] sm:$0xf]
    %v138 = vld [vmem:[#allocation2 + $0xf0] sm:$0xf]
    %v139 = vld [vmem:[#allocation2 + $0xf4] sm:$0xf]
    %v140 = vld [vmem:[#allocation2 + $0xf8] sm:$0xf]
    %v141 = vld [vmem:[#allocation2 + $0xfc] sm:$0xf]
    %v142 = vld [vmem:[%s2] sm:$0xff]
    %v143 = vld [vmem:[%s2 + $0x8] sm:$0xff]
    %v144 = vld [vmem:[%s2 + $0x10] sm:$0xff]
    %v145 = vld [vmem:[%s2 + $0x18] sm:$0xff]
    %v146 = vld [vmem:[%s2 + $0x20] sm:$0xff]
    %v147 = vld [vmem:[%s2 + $0x28] sm:$0xff]
    %v148 = vld [vmem:[%s2 + $0x30] sm:$0xff]
    %v149 = vld [vmem:[%s2 + $0x38] sm:$0xff]
    %v150 = vld [vmem:[%s2 + $0x40] sm:$0xff]
    %v151 = vld [vmem:[%s2 + $0x48] sm:$0xff]
    %v152 = vld [vmem:[%s2 + $0x50] sm:$0xff]
    %v153 = vld [vmem:[%s2 + $0x58] sm:$0xff]
    %v154 = vld [vmem:[%s2 + $0x60] sm:$0xff]
    %v155 = vld [vmem:[%s2 + $0x68] sm:$0xff]
    %v156 = vld [vmem:[%s2 + $0x70] sm:$0xff]
    %v157 = vld [vmem:[%s2 + $0x78] sm:$0xff]
    %v158 = vld [vmem:[%s2 + $0x80] sm:$0xff]
    %v159 = vld [vmem:[%s2 + $0x88] sm:$0xff]
    %v160 = vld [vmem:[%s2 + $0x90] sm:$0xff]
    %v161 = vld [vmem:[%s2 + $0x98] sm:$0xff]
    %v162 = vld [vmem:[%s2 + $0xa0] sm:$0xff]
    %v163 = vld [vmem:[%s2 + $0xa8] sm:$0xff]
    %v164 = vld [vmem:[%s2 + $0xb0] sm:$0xff]
    %v165 = vld [vmem:[%s2 + $0xb8] sm:$0xff]
    %v166 = vld [vmem:[%s2 + $0xc0] sm:$0xff]
    %v167 = vld [vmem:[%s2 + $0xc8] sm:$0xff]
    %v168 = vld [vmem:[%s2 + $0xd0] sm:$0xff]
    %v169 = vld [vmem:[%s2 + $0xd8] sm:$0xff]
    %v170 = vld [vmem:[%s2 + $0xe0] sm:$0xff]
    %v171 = vld [vmem:[%s2 + $0xe8] sm:$0xff]
    %v172 = vld [vmem:[%s2 + $0xf0] sm:$0xff]
    %v173 = vld [vmem:[%s2 + $0xf8] sm:$0xff]
    %v174 = vld [vmem:[%s2 + $0x100] sm:$0xff]
    %v175 = vld [vmem:[%s2 + $0x108] sm:$0xff]
    %v176 = vld [vmem:[%s2 + $0x110] sm:$0xff]
    %v177 = vld [vmem:[%s2 + $0x118] sm:$0xff]
    %v178 = vld [vmem:[%s2 + $0x120] sm:$0xff]
    %v179 = vld [vmem:[%s2 + $0x128] sm:$0xff]
    %v180 = vld [vmem:[%s2 + $0x130] sm:$0xff]
    %v181 = vld [vmem:[%s2 + $0x138] sm:$0xff]
    %v182 = vld [vmem:[%s2 + $0x140] sm:$0xff]
    %v183 = vld [vmem:[%s2 + $0x148] sm:$0xff]
    %v184 = vld [vmem:[%s2 + $0x150] sm:$0xff]
    %v185 = vld [vmem:[%s2 + $0x158] sm:$0xff]
    %v186 = vld [vmem:[%s2 + $0x160] sm:$0xff]
    %v187 = vld [vmem:[%s2 + $0x168] sm:$0xff]
    %v188 = vld [vmem:[%s2 + $0x170] sm:$0xff]
    %v189 = vld [vmem:[%s2 + $0x178] sm:$0xff]
    %v190 = vld [vmem:[%s2 + $0x180] sm:$0xff]
    %v191 = vld [vmem:[%s2 + $0x188] sm:$0xff]
    %v192 = vld [vmem:[%s2 + $0x190] sm:$0xff]
    %v193 = vld [vmem:[%s2 + $0x198] sm:$0xff]
    %v194 = vld [vmem:[%s2 + $0x1a0] sm:$0xff]
    %v195 = vld [vmem:[%s2 + $0x1a8] sm:$0xff]
    %v196 = vld [vmem:[%s2 + $0x1b0] sm:$0xff]
    %v197 = vld [vmem:[%s2 + $0x1b8] sm:$0xff]
    %v198 = vld [vmem:[%s2 + $0x1c0] sm:$0xff]
    %v199 = vld [vmem:[%s2 + $0x1c8] sm:$0xff]
    %v200 = vld [vmem:[%s2 + $0x1d0] sm:$0xff]
    %v201 = vld [vmem:[%s2 + $0x1d8] sm:$0xff]
    %v202 = vld [vmem:[%s2 + $0x1e0] sm:$0xff]
    %v203 = vld [vmem:[%s2 + $0x1e8] sm:$0xff]
    %v204 = vld [vmem:[%s2 + $0x1f0] sm:$0xff]
    %v205 = vld [vmem:[%s2 + $0x1f8] sm:$0xff]
    %207 = vset.pattern.permute.xlu0 0
    %208 = vperm.xlu0 %207, %v142
    %v209 = vpop.permute.xlu0 %208
    %212 = vset.pattern.permute.xlu0 0
    %213 = vperm.xlu0 %212, %v143
    %v214 = vpop.permute.xlu0 %213
    %217 = vset.pattern.permute.xlu0 0
    %218 = vperm.xlu0 %217, %v144
    %v219 = vpop.permute.xlu0 %218
    %222 = vset.pattern.permute.xlu0 0
    %223 = vperm.xlu0 %222, %v145
    %v224 = vpop.permute.xlu0 %223
    %227 = vset.pattern.permute.xlu0 0
    %228 = vperm.xlu0 %227, %v146
    %v229 = vpop.permute.xlu0 %228
    %232 = vset.pattern.permute.xlu0 0
    %233 = vperm.xlu0 %232, %v147
    %v234 = vpop.permute.xlu0 %233
    %237 = vset.pattern.permute.xlu0 0
    %238 = vperm.xlu0 %237, %v148
    %v239 = vpop.permute.xlu0 %238
    %242 = vset.pattern.permute.xlu0 0
    %243 = vperm.xlu0 %242, %v149
    %v244 = vpop.permute.xlu0 %243
    %247 = vset.pattern.permute.xlu0 0
    %248 = vperm.xlu0 %247, %v150
    %v249 = vpop.permute.xlu0 %248
    %252 = vset.pattern.permute.xlu0 0
    %253 = vperm.xlu0 %252, %v151
    %v254 = vpop.permute.xlu0 %253
    %257 = vset.pattern.permute.xlu0 0
    %258 = vperm.xlu0 %257, %v152
    %v259 = vpop.permute.xlu0 %258
    %262 = vset.pattern.permute.xlu0 0
    %263 = vperm.xlu0 %262, %v153
    %v264 = vpop.permute.xlu0 %263
    %267 = vset.pattern.permute.xlu0 0
    %268 = vperm.xlu0 %267, %v154
    %v269 = vpop.permute.xlu0 %268
    %272 = vset.pattern.permute.xlu0 0
    %273 = vperm.xlu0 %272, %v155
    %v274 = vpop.permute.xlu0 %273
    %277 = vset.pattern.permute.xlu0 0
    %278 = vperm.xlu0 %277, %v156
    %v279 = vpop.permute.xlu0 %278
    %282 = vset.pattern.permute.xlu0 0
    %283 = vperm.xlu0 %282, %v157
    %v284 = vpop.permute.xlu0 %283
    %287 = vset.pattern.permute.xlu0 0
    %288 = vperm.xlu0 %287, %v158
    %v289 = vpop.permute.xlu0 %288
    %292 = vset.pattern.permute.xlu0 0
    %293 = vperm.xlu0 %292, %v159
    %v294 = vpop.permute.xlu0 %293
    %297 = vset.pattern.permute.xlu0 0
    %298 = vperm.xlu0 %297, %v160
    %v299 = vpop.permute.xlu0 %298
    %302 = vset.pattern.permute.xlu0 0
    %303 = vperm.xlu0 %302, %v161
    %v304 = vpop.permute.xlu0 %303
    %307 = vset.pattern.permute.xlu0 0
    %308 = vperm.xlu0 %307, %v162
    %v309 = vpop.permute.xlu0 %308
    %312 = vset.pattern.permute.xlu0 0
    %313 = vperm.xlu0 %312, %v163
    %v314 = vpop.permute.xlu0 %313
    %317 = vset.pattern.permute.xlu0 0
    %318 = vperm.xlu0 %317, %v164
    %v319 = vpop.permute.xlu0 %318
    %322 = vset.pattern.permute.xlu0 0
    %323 = vperm.xlu0 %322, %v165
    %v324 = vpop.permute.xlu0 %323
    %327 = vset.pattern.permute.xlu0 0
    %328 = vperm.xlu0 %327, %v166
    %v329 = vpop.permute.xlu0 %328
    %332 = vset.pattern.permute.xlu0 0
    %333 = vperm.xlu0 %332, %v167
    %v334 = vpop.permute.xlu0 %333
    %337 = vset.pattern.permute.xlu0 0
    %338 = vperm.xlu0 %337, %v168
    %v339 = vpop.permute.xlu0 %338
    %342 = vset.pattern.permute.xlu0 0
    %343 = vperm.xlu0 %342, %v169
    %v344 = vpop.permute.xlu0 %343
    %347 = vset.pattern.permute.xlu0 0
    %348 = vperm.xlu0 %347, %v170
    %v349 = vpop.permute.xlu0 %348
    %352 = vset.pattern.permute.xlu0 0
    %353 = vperm.xlu0 %352, %v171
    %v354 = vpop.permute.xlu0 %353
    %357 = vset.pattern.permute.xlu0 0
    %358 = vperm.xlu0 %357, %v172
    %v359 = vpop.permute.xlu0 %358
    %362 = vset.pattern.permute.xlu0 0
    %363 = vperm.xlu0 %362, %v173
    %v364 = vpop.permute.xlu0 %363
    %367 = vset.pattern.permute.xlu0 0
    %368 = vperm.xlu0 %367, %v174
    %v369 = vpop.permute.xlu0 %368
    %372 = vset.pattern.permute.xlu0 0
    %373 = vperm.xlu0 %372, %v175
    %v374 = vpop.permute.xlu0 %373
    %377 = vset.pattern.permute.xlu0 0
    %378 = vperm.xlu0 %377, %v176
    %v379 = vpop.permute.xlu0 %378
    %382 = vset.pattern.permute.xlu0 0
    %383 = vperm.xlu0 %382, %v177
    %v384 = vpop.permute.xlu0 %383
    %387 = vset.pattern.permute.xlu0 0
    %388 = vperm.xlu0 %387, %v178
    %v389 = vpop.permute.xlu0 %388
    %392 = vset.pattern.permute.xlu0 0
    %393 = vperm.xlu0 %392, %v179
    %v394 = vpop.permute.xlu0 %393
    %397 = vset.pattern.permute.xlu0 0
    %398 = vperm.xlu0 %397, %v180
    %v399 = vpop.permute.xlu0 %398
    %402 = vset.pattern.permute.xlu0 0
    %403 = vperm.xlu0 %402, %v181
    %v404 = vpop.permute.xlu0 %403
    %407 = vset.pattern.permute.xlu0 0
    %408 = vperm.xlu0 %407, %v182
    %v409 = vpop.permute.xlu0 %408
    %412 = vset.pattern.permute.xlu0 0
    %413 = vperm.xlu0 %412, %v183
    %v414 = vpop.permute.xlu0 %413
    %417 = vset.pattern.permute.xlu0 0
    %418 = vperm.xlu0 %417, %v184
    %v419 = vpop.permute.xlu0 %418
    %422 = vset.pattern.permute.xlu0 0
    %423 = vperm.xlu0 %422, %v185
    %v424 = vpop.permute.xlu0 %423
    %427 = vset.pattern.permute.xlu0 0
    %428 = vperm.xlu0 %427, %v186
    %v429 = vpop.permute.xlu0 %428
    %432 = vset.pattern.permute.xlu0 0
    %433 = vperm.xlu0 %432, %v187
    %v434 = vpop.permute.xlu0 %433
    %437 = vset.pattern.permute.xlu0 0
    %438 = vperm.xlu0 %437, %v188
    %v439 = vpop.permute.xlu0 %438
    %442 = vset.pattern.permute.xlu0 0
    %443 = vperm.xlu0 %442, %v189
    %v444 = vpop.permute.xlu0 %443
    %447 = vset.pattern.permute.xlu0 0
    %448 = vperm.xlu0 %447, %v190
    %v449 = vpop.permute.xlu0 %448
    %452 = vset.pattern.permute.xlu0 0
    %453 = vperm.xlu0 %452, %v191
    %v454 = vpop.permute.xlu0 %453
    %457 = vset.pattern.permute.xlu0 0
    %458 = vperm.xlu0 %457, %v192
    %v459 = vpop.permute.xlu0 %458
    %462 = vset.pattern.permute.xlu0 0
    %463 = vperm.xlu0 %462, %v193
    %v464 = vpop.permute.xlu0 %463
    %467 = vset.pattern.permute.xlu0 0
    %468 = vperm.xlu0 %467, %v194
    %v469 = vpop.permute.xlu0 %468
    %472 = vset.pattern.permute.xlu0 0
    %473 = vperm.xlu0 %472, %v195
    %v474 = vpop.permute.xlu0 %473
    %477 = vset.pattern.permute.xlu0 0
    %478 = vperm.xlu0 %477, %v196
    %v479 = vpop.permute.xlu0 %478
    %482 = vset.pattern.permute.xlu0 0
    %483 = vperm.xlu0 %482, %v197
    %v484 = vpop.permute.xlu0 %483
    %487 = vset.pattern.permute.xlu0 0
    %488 = vperm.xlu0 %487, %v198
    %v489 = vpop.permute.xlu0 %488
    %492 = vset.pattern.permute.xlu0 0
    %493 = vperm.xlu0 %492, %v199
    %v494 = vpop.permute.xlu0 %493
    %497 = vset.pattern.permute.xlu0 0
    %498 = vperm.xlu0 %497, %v200
    %v499 = vpop.permute.xlu0 %498
    %502 = vset.pattern.permute.xlu0 0
    %503 = vperm.xlu0 %502, %v201
    %v504 = vpop.permute.xlu0 %503
    %507 = vset.pattern.permute.xlu0 0
    %508 = vperm.xlu0 %507, %v202
    %v509 = vpop.permute.xlu0 %508
    %512 = vset.pattern.permute.xlu0 0
    %513 = vperm.xlu0 %512, %v203
    %v514 = vpop.permute.xlu0 %513
    %517 = vset.pattern.permute.xlu0 0
    %518 = vperm.xlu0 %517, %v204
    %v519 = vpop.permute.xlu0 %518
    %522 = vset.pattern.permute.xlu0 0
    %523 = vperm.xlu0 %522, %v205
    %v524 = vpop.permute.xlu0 %523
    %v590 = vunpack.c.l.b16 %v78
    %v591 = vunpack.c.l.b16 %v79
    %v592 = vunpack.c.l.b16 %v80
    %v593 = vunpack.c.l.b16 %v81
    %v594 = vunpack.c.l.b16 %v82
    %v595 = vunpack.c.l.b16 %v83
    %v596 = vunpack.c.l.b16 %v84
    %v597 = vunpack.c.l.b16 %v85
    %v598 = vunpack.c.l.b16 %v86
    %v599 = vunpack.c.l.b16 %v87
    %v600 = vunpack.c.l.b16 %v88
    %v601 = vunpack.c.l.b16 %v89
    %v602 = vunpack.c.l.b16 %v90
    %v603 = vunpack.c.l.b16 %v91
    %v604 = vunpack.c.l.b16 %v92
    %v605 = vunpack.c.l.b16 %v93
    %v606 = vunpack.c.l.b16 %v94
    %v607 = vunpack.c.l.b16 %v95
    %v608 = vunpack.c.l.b16 %v96
    %v609 = vunpack.c.l.b16 %v97
    %v610 = vunpack.c.l.b16 %v98
    %v611 = vunpack.c.l.b16 %v99
    %v612 = vunpack.c.l.b16 %v100
    %v613 = vunpack.c.l.b16 %v101
    %v614 = vunpack.c.l.b16 %v102
    %v615 = vunpack.c.l.b16 %v103
    %v616 = vunpack.c.l.b16 %v104
    %v617 = vunpack.c.l.b16 %v105
    %v618 = vunpack.c.l.b16 %v106
    %v619 = vunpack.c.l.b16 %v107
    %v620 = vunpack.c.l.b16 %v108
    %v621 = vunpack.c.l.b16 %v109
    %v622 = vunpack.c.l.b16 %v110
    %v623 = vunpack.c.l.b16 %v111
    %v624 = vunpack.c.l.b16 %v112
    %v625 = vunpack.c.l.b16 %v113
    %v626 = vunpack.c.l.b16 %v114
    %v627 = vunpack.c.l.b16 %v115
    %v628 = vunpack.c.l.b16 %v116
    %v629 = vunpack.c.l.b16 %v117
    %v630 = vunpack.c.l.b16 %v118
    %v631 = vunpack.c.l.b16 %v119
    %v632 = vunpack.c.l.b16 %v120
    %v633 = vunpack.c.l.b16 %v121
    %v634 = vunpack.c.l.b16 %v122
    %v635 = vunpack.c.l.b16 %v123
    %v636 = vunpack.c.l.b16 %v124
    %v637 = vunpack.c.l.b16 %v125
    %v638 = vunpack.c.l.b16 %v126
    %v639 = vunpack.c.l.b16 %v127
    %v640 = vunpack.c.l.b16 %v128
    %v641 = vunpack.c.l.b16 %v129
    %v642 = vunpack.c.l.b16 %v130
    %v643 = vunpack.c.l.b16 %v131
    %v644 = vunpack.c.l.b16 %v132
    %v645 = vunpack.c.l.b16 %v133
    %v646 = vunpack.c.l.b16 %v134
    %v647 = vunpack.c.l.b16 %v135
    %v648 = vunpack.c.l.b16 %v136
    %v649 = vunpack.c.l.b16 %v137
    %v650 = vunpack.c.l.b16 %v138
    %v651 = vunpack.c.l.b16 %v139
    %v652 = vunpack.c.l.b16 %v140
    %v653 = vunpack.c.l.b16 %v141
    %v654 = vpack.c.b16 %v591, %v590
    %v655 = vpack.c.b16 %v593, %v592
    %v656 = vpack.c.b16 %v595, %v594
    %v657 = vpack.c.b16 %v597, %v596
    %v658 = vpack.c.b16 %v599, %v598
    %v659 = vpack.c.b16 %v601, %v600
    %v660 = vpack.c.b16 %v603, %v602
    %v661 = vpack.c.b16 %v605, %v604
    %v662 = vpack.c.b16 %v607, %v606
    %v663 = vpack.c.b16 %v609, %v608
    %v664 = vpack.c.b16 %v611, %v610
    %v665 = vpack.c.b16 %v613, %v612
    %v666 = vpack.c.b16 %v615, %v614
    %v667 = vpack.c.b16 %v617, %v616
    %v668 = vpack.c.b16 %v619, %v618
    %v669 = vpack.c.b16 %v621, %v620
    %v670 = vpack.c.b16 %v623, %v622
    %v671 = vpack.c.b16 %v625, %v624
    %v672 = vpack.c.b16 %v627, %v626
    %v673 = vpack.c.b16 %v629, %v628
    %v674 = vpack.c.b16 %v631, %v630
    %v675 = vpack.c.b16 %v633, %v632
    %v676 = vpack.c.b16 %v635, %v634
    %v677 = vpack.c.b16 %v637, %v636
    %v678 = vpack.c.b16 %v639, %v638
    %v679 = vpack.c.b16 %v641, %v640
    %v680 = vpack.c.b16 %v643, %v642
    %v681 = vpack.c.b16 %v645, %v644
    %v682 = vpack.c.b16 %v647, %v646
    %v683 = vpack.c.b16 %v649, %v648
    %v684 = vpack.c.b16 %v651, %v650
    %v685 = vpack.c.b16 %v653, %v652
    %v734 = vunpack.c.l.b16 %v62
    %v735 = vunpack.c.l.b16 %v63
    %v736 = vunpack.c.l.b16 %v64
    %v737 = vunpack.c.l.b16 %v65
    %v738 = vunpack.c.l.b16 %v66
    %v739 = vunpack.c.l.b16 %v67
    %v740 = vunpack.c.l.b16 %v68
    %v741 = vunpack.c.l.b16 %v69
    %v742 = vunpack.c.l.b16 %v70
    %v743 = vunpack.c.l.b16 %v71
    %v744 = vunpack.c.l.b16 %v72
    %v745 = vunpack.c.l.b16 %v73
    %v746 = vunpack.c.l.b16 %v74
    %v747 = vunpack.c.l.b16 %v75
    %v748 = vunpack.c.l.b16 %v76
    %v749 = vunpack.c.l.b16 %v77
    %v750 = vpack.c.b16 %v735, %v734
    %v751 = vpack.c.b16 %v737, %v736
    %v752 = vpack.c.b16 %v739, %v738
    %v753 = vpack.c.b16 %v741, %v740
    %v754 = vpack.c.b16 %v743, %v742
    %v755 = vpack.c.b16 %v745, %v744
    %v756 = vpack.c.b16 %v747, %v746
    %v757 = vpack.c.b16 %v749, %v748
    %766 = vmatprep.subr.bf16.mxu0 0
    %767 = vmatpush1.bf16.msra.mxu0 %v750
    %768 = vmatprep.subr.bf16.mxu0 0
    %769 = vmatpush1.bf16.msra.mxu0 %v751
    %770 = vmatprep.subr.bf16.mxu0 0
    %771 = vmatpush1.bf16.msra.mxu0 %v752
    %772 = vmatprep.subr.bf16.mxu0 0
    %773 = vmatpush1.bf16.msra.mxu0 %v753
    %774 = vmatprep.subr.bf16.mxu0 0
    %775 = vmatpush1.bf16.msra.mxu0 %v754
    %776 = vmatprep.subr.bf16.mxu0 0
    %777 = vmatpush1.bf16.msra.mxu0 %v755
    %778 = vmatprep.subr.bf16.mxu0 0
    %779 = vmatpush1.bf16.msra.mxu0 %v756
    %780 = vmatprep.subr.bf16.mxu0 0
    %781 = vmatpush1.bf16.msra.mxu0 %v757
    %782 = vmatprep.subr.bf16.mxu0 0
    %783 = vmatpush1.bf16.msra.mxu0 0
    %784 = vmatprep.subr.bf16.mxu0 0
    %785 = vmatpush1.bf16.msra.mxu0 0
    %786 = vmatprep.subr.bf16.mxu0 0
    %787 = vmatpush1.bf16.msra.mxu0 0
    %788 = vmatprep.subr.bf16.mxu0 0
    %789 = vmatpush1.bf16.msra.mxu0 0
    %790 = vmatprep.subr.bf16.mxu0 0
    %791 = vmatpush1.bf16.msra.mxu0 0
    %792 = vmatprep.subr.bf16.mxu0 0
    %793 = vmatpush1.bf16.msra.mxu0 0
    %794 = vmatprep.subr.bf16.mxu0 0
    %795 = vmatpush1.bf16.msra.mxu0 0
    %796 = vmatprep.subr.bf16.mxu0 0
    %797 = vmatpush1.bf16.msra.mxu0 0
    %798 = vmatprep.mubr.bf16.mxu0 0
    %799 = vmatmul.mubr.bf16.gmra.mrb[0].mxu0 %v654
    %v800 = vpop.f32.mrb[0].mxu0
    %v801 = vadd.f32 %v209, %v800
    %v802 = vpop.f32.mrb[0].mxu0
    %v803 = vpop.f32.mrb[0].mxu0
    %v804 = vadd.f32 %v214, %v803
    %v805 = vpop.f32.mrb[0].mxu0
    %806 = vmatprep.mubr.bf16.mxu0 0
    %807 = vmatmul.mubr.bf16.gmra.mrb[0].mxu0 %v655
    %v808 = vpop.f32.mrb[0].mxu0
    %v809 = vadd.f32 %v219, %v808
    %v810 = vpop.f32.mrb[0].mxu0
    %v811 = vpop.f32.mrb[0].mxu0
    %v812 = vadd.f32 %v224, %v811
    %v813 = vpop.f32.mrb[0].mxu0
    %814 = vmatprep.mubr.bf16.mxu0 0
    %815 = vmatmul.mubr.bf16.gmra.mrb[0].mxu0 %v656
    %v816 = vpop.f32.mrb[0].mxu0
    %v817 = vadd.f32 %v229, %v816
    %v818 = vpop.f32.mrb[0].mxu0
    %v819 = vpop.f32.mrb[0].mxu0
    %v820 = vadd.f32 %v234, %v819
    %v821 = vpop.f32.mrb[0].mxu0
    %822 = vmatprep.mubr.bf16.mxu0 0
    %823 = vmatmul.mubr.bf16.gmra.mrb[0].mxu0 %v657
    %v824 = vpop.f32.mrb[0].mxu0
    %v825 = vadd.f32 %v239, %v824
    %v826 = vpop.f32.mrb[0].mxu0
    %v827 = vpop.f32.mrb[0].mxu0
    %v828 = vadd.f32 %v244, %v827
    %v829 = vpop.f32.mrb[0].mxu0
    %830 = vmatprep.mubr.bf16.mxu0 0
    %831 = vmatmul.mubr.bf16.gmra.mrb[0].mxu0 %v658
    %v832 = vpop.f32.mrb[0].mxu0
    %v833 = vadd.f32 %v249, %v832
    %v834 = vpop.f32.mrb[0].mxu0
    %v835 = vpop.f32.mrb[0].mxu0
    %v836 = vadd.f32 %v254, %v835
    %v837 = vpop.f32.mrb[0].mxu0
    %838 = vmatprep.mubr.bf16.mxu0 0
    %839 = vmatmul.mubr.bf16.gmra.mrb[0].mxu0 %v659
    %v840 = vpop.f32.mrb[0].mxu0
    %v841 = vadd.f32 %v259, %v840
    %v842 = vpop.f32.mrb[0].mxu0
    %v843 = vpop.f32.mrb[0].mxu0
    %v844 = vadd.f32 %v264, %v843
    %v845 = vpop.f32.mrb[0].mxu0
    %846 = vmatprep.mubr.bf16.mxu0 0
    %847 = vmatmul.mubr.bf16.gmra.mrb[0].mxu0 %v660
    %v848 = vpop.f32.mrb[0].mxu0
    %v849 = vadd.f32 %v269, %v848
    %v850 = vpop.f32.mrb[0].mxu0
    %v851 = vpop.f32.mrb[0].mxu0
    %v852 = vadd.f32 %v274, %v851
    %v853 = vpop.f32.mrb[0].mxu0
    %854 = vmatprep.mubr.bf16.mxu0 0
    %855 = vmatmul.mubr.bf16.gmra.mrb[0].mxu0 %v661
    %v856 = vpop.f32.mrb[0].mxu0
    %v857 = vadd.f32 %v279, %v856
    %v858 = vpop.f32.mrb[0].mxu0
    %v859 = vpop.f32.mrb[0].mxu0
    %v860 = vadd.f32 %v284, %v859
    %v861 = vpop.f32.mrb[0].mxu0
    %862 = vmatprep.mubr.bf16.mxu0 0
    %863 = vmatmul.mubr.bf16.gmra.mrb[0].mxu0 %v662
    %v864 = vpop.f32.mrb[0].mxu0
    %v865 = vadd.f32 %v289, %v864
    %v866 = vpop.f32.mrb[0].mxu0
    %v867 = vpop.f32.mrb[0].mxu0
    %v868 = vadd.f32 %v294, %v867
    %v869 = vpop.f32.mrb[0].mxu0
    %870 = vmatprep.mubr.bf16.mxu0 0
    %871 = vmatmul.mubr.bf16.gmra.mrb[0].mxu0 %v663
    %v872 = vpop.f32.mrb[0].mxu0
    %v873 = vadd.f32 %v299, %v872
    %v874 = vpop.f32.mrb[0].mxu0
    %v875 = vpop.f32.mrb[0].mxu0
    %v876 = vadd.f32 %v304, %v875
    %v877 = vpop.f32.mrb[0].mxu0
    %878 = vmatprep.mubr.bf16.mxu0 0
    %879 = vmatmul.mubr.bf16.gmra.mrb[0].mxu0 %v664
    %v880 = vpop.f32.mrb[0].mxu0
    %v881 = vadd.f32 %v309, %v880
    %v882 = vpop.f32.mrb[0].mxu0
    %v883 = vpop.f32.mrb[0].mxu0
    %v884 = vadd.f32 %v314, %v883
    %v885 = vpop.f32.mrb[0].mxu0
    %886 = vmatprep.mubr.bf16.mxu0 0
    %887 = vmatmul.mubr.bf16.gmra.mrb[0].mxu0 %v665
    %v888 = vpop.f32.mrb[0].mxu0
    %v889 = vadd.f32 %v319, %v888
    %v890 = vpop.f32.mrb[0].mxu0
    %v891 = vpop.f32.mrb[0].mxu0
    %v892 = vadd.f32 %v324, %v891
    %v893 = vpop.f32.mrb[0].mxu0
    %894 = vmatprep.mubr.bf16.mxu0 0
    %895 = vmatmul.mubr.bf16.gmra.mrb[0].mxu0 %v666
    %v896 = vpop.f32.mrb[0].mxu0
    %v897 = vadd.f32 %v329, %v896
    %v898 = vpop.f32.mrb[0].mxu0
    %v899 = vpop.f32.mrb[0].mxu0
    %v900 = vadd.f32 %v334, %v899
    %v901 = vpop.f32.mrb[0].mxu0
    %902 = vmatprep.mubr.bf16.mxu0 0
    %903 = vmatmul.mubr.bf16.gmra.mrb[0].mxu0 %v667
    %v904 = vpop.f32.mrb[0].mxu0
    %v905 = vadd.f32 %v339, %v904
    %v906 = vpop.f32.mrb[0].mxu0
    %v907 = vpop.f32.mrb[0].mxu0
    %v908 = vadd.f32 %v344, %v907
    %v909 = vpop.f32.mrb[0].mxu0
    %910 = vmatprep.mubr.bf16.mxu0 0
    %911 = vmatmul.mubr.bf16.gmra.mrb[0].mxu0 %v668
    %v912 = vpop.f32.mrb[0].mxu0
    %v913 = vadd.f32 %v349, %v912
    %v914 = vpop.f32.mrb[0].mxu0
    %v915 = vpop.f32.mrb[0].mxu0
    %v916 = vadd.f32 %v354, %v915
    %v917 = vpop.f32.mrb[0].mxu0
    %918 = vmatprep.mubr.bf16.mxu0 0
    %919 = vmatmul.mubr.bf16.gmra.mrb[0].mxu0 %v669
    %v920 = vpop.f32.mrb[0].mxu0
    %v921 = vadd.f32 %v359, %v920
    %v922 = vpop.f32.mrb[0].mxu0
    %v923 = vpop.f32.mrb[0].mxu0
    %v924 = vadd.f32 %v364, %v923
    %v925 = vpop.f32.mrb[0].mxu0
    %926 = vmatprep.mubr.bf16.mxu0 0
    %927 = vmatmul.mubr.bf16.gmra.mrb[0].mxu0 %v670
    %v928 = vpop.f32.mrb[0].mxu0
    %v929 = vadd.f32 %v369, %v928
    %v930 = vpop.f32.mrb[0].mxu0
    %v931 = vpop.f32.mrb[0].mxu0
    %v932 = vadd.f32 %v374, %v931
    %v933 = vpop.f32.mrb[0].mxu0
    %934 = vmatprep.mubr.bf16.mxu0 0
    %935 = vmatmul.mubr.bf16.gmra.mrb[0].mxu0 %v671
    %v936 = vpop.f32.mrb[0].mxu0
    %v937 = vadd.f32 %v379, %v936
    %v938 = vpop.f32.mrb[0].mxu0
    %v939 = vpop.f32.mrb[0].mxu0
    %v940 = vadd.f32 %v384, %v939
    %v941 = vpop.f32.mrb[0].mxu0
    %942 = vmatprep.mubr.bf16.mxu0 0
    %943 = vmatmul.mubr.bf16.gmra.mrb[0].mxu0 %v672
    %v944 = vpop.f32.mrb[0].mxu0
    %v945 = vadd.f32 %v389, %v944
    %v946 = vpop.f32.mrb[0].mxu0
    %v947 = vpop.f32.mrb[0].mxu0
    %v948 = vadd.f32 %v394, %v947
    %v949 = vpop.f32.mrb[0].mxu0
    %950 = vmatprep.mubr.bf16.mxu0 0
    %951 = vmatmul.mubr.bf16.gmra.mrb[0].mxu0 %v673
    %v952 = vpop.f32.mrb[0].mxu0
    %v953 = vadd.f32 %v399, %v952
    %v954 = vpop.f32.mrb[0].mxu0
    %v955 = vpop.f32.mrb[0].mxu0
    %v956 = vadd.f32 %v404, %v955
    %v957 = vpop.f32.mrb[0].mxu0
    %958 = vmatprep.mubr.bf16.mxu0 0
    %959 = vmatmul.mubr.bf16.gmra.mrb[0].mxu0 %v674
    %v960 = vpop.f32.mrb[0].mxu0
    %v961 = vadd.f32 %v409, %v960
    %v962 = vpop.f32.mrb[0].mxu0
    %v963 = vpop.f32.mrb[0].mxu0
    %v964 = vadd.f32 %v414, %v963
    %v965 = vpop.f32.mrb[0].mxu0
    %966 = vmatprep.mubr.bf16.mxu0 0
    %967 = vmatmul.mubr.bf16.gmra.mrb[0].mxu0 %v675
    %v968 = vpop.f32.mrb[0].mxu0
    %v969 = vadd.f32 %v419, %v968
    %v970 = vpop.f32.mrb[0].mxu0
    %v971 = vpop.f32.mrb[0].mxu0
    %v972 = vadd.f32 %v424, %v971
    %v973 = vpop.f32.mrb[0].mxu0
    %974 = vmatprep.mubr.bf16.mxu0 0
    %975 = vmatmul.mubr.bf16.gmra.mrb[0].mxu0 %v676
    %v976 = vpop.f32.mrb[0].mxu0
    %v977 = vadd.f32 %v429, %v976
    %v978 = vpop.f32.mrb[0].mxu0
    %v979 = vpop.f32.mrb[0].mxu0
    %v980 = vadd.f32 %v434, %v979
    %v981 = vpop.f32.mrb[0].mxu0
    %982 = vmatprep.mubr.bf16.mxu0 0
    %983 = vmatmul.mubr.bf16.gmra.mrb[0].mxu0 %v677
    %v984 = vpop.f32.mrb[0].mxu0
    %v985 = vadd.f32 %v439, %v984
    %v986 = vpop.f32.mrb[0].mxu0
    %v987 = vpop.f32.mrb[0].mxu0
    %v988 = vadd.f32 %v444, %v987
    %v989 = vpop.f32.mrb[0].mxu0
    %990 = vmatprep.mubr.bf16.mxu0 0
    %991 = vmatmul.mubr.bf16.gmra.mrb[0].mxu0 %v678
    %v992 = vpop.f32.mrb[0].mxu0
    %v993 = vadd.f32 %v449, %v992
    %v994 = vpop.f32.mrb[0].mxu0
    %v995 = vpop.f32.mrb[0].mxu0
    %v996 = vadd.f32 %v454, %v995
    %v997 = vpop.f32.mrb[0].mxu0
    %998 = vmatprep.mubr.bf16.mxu0 0
    %999 = vmatmul.mubr.bf16.gmra.mrb[0].mxu0 %v679
    %v1000 = vpop.f32.mrb[0].mxu0
    %v1001 = vadd.f32 %v459, %v1000
    %v1002 = vpop.f32.mrb[0].mxu0
    %v1003 = vpop.f32.mrb[0].mxu0
    %v1004 = vadd.f32 %v464, %v1003
    %v1005 = vpop.f32.mrb[0].mxu0
    %1006 = vmatprep.mubr.bf16.mxu0 0
    %1007 = vmatmul.mubr.bf16.gmra.mrb[0].mxu0 %v680
    %v1008 = vpop.f32.mrb[0].mxu0
    %v1009 = vadd.f32 %v469, %v1008
    %v1010 = vpop.f32.mrb[0].mxu0
    %v1011 = vpop.f32.mrb[0].mxu0
    %v1012 = vadd.f32 %v474, %v1011
    %v1013 = vpop.f32.mrb[0].mxu0
    %1014 = vmatprep.mubr.bf16.mxu0 0
    %1015 = vmatmul.mubr.bf16.gmra.mrb[0].mxu0 %v681
    %v1016 = vpop.f32.mrb[0].mxu0
    %v1017 = vadd.f32 %v479, %v1016
    %v1018 = vpop.f32.mrb[0].mxu0
    %v1019 = vpop.f32.mrb[0].mxu0
    %v1020 = vadd.f32 %v484, %v1019
    %v1021 = vpop.f32.mrb[0].mxu0
    %1022 = vmatprep.mubr.bf16.mxu0 0
    %1023 = vmatmul.mubr.bf16.gmra.mrb[0].mxu0 %v682
    %v1024 = vpop.f32.mrb[0].mxu0
    %v1025 = vadd.f32 %v489, %v1024
    %v1026 = vpop.f32.mrb[0].mxu0
    %v1027 = vpop.f32.mrb[0].mxu0
    %v1028 = vadd.f32 %v494, %v1027
    %v1029 = vpop.f32.mrb[0].mxu0
    %1030 = vmatprep.mubr.bf16.mxu0 0
    %1031 = vmatmul.mubr.bf16.gmra.mrb[0].mxu0 %v683
    %v1032 = vpop.f32.mrb[0].mxu0
    %v1033 = vadd.f32 %v499, %v1032
    %v1034 = vpop.f32.mrb[0].mxu0
    %v1035 = vpop.f32.mrb[0].mxu0
    %v1036 = vadd.f32 %v504, %v1035
    %v1037 = vpop.f32.mrb[0].mxu0
    %1038 = vmatprep.mubr.bf16.mxu0 0
    %1039 = vmatmul.mubr.bf16.gmra.mrb[0].mxu0 %v684
    %v1040 = vpop.f32.mrb[0].mxu0
    %v1041 = vadd.f32 %v509, %v1040
    %v1042 = vpop.f32.mrb[0].mxu0
    %v1043 = vpop.f32.mrb[0].mxu0
    %v1044 = vadd.f32 %v514, %v1043
    %v1045 = vpop.f32.mrb[0].mxu0
    %1046 = vmatprep.mubr.bf16.mxu0 0
    %1047 = vmatmul.mubr.bf16.gmra.mrb[0].mxu0 %v685
    %v1048 = vpop.f32.mrb[0].mxu0
    %v1049 = vadd.f32 %v519, %v1048
    %v1050 = vpop.f32.mrb[0].mxu0
    %v1051 = vpop.f32.mrb[0].mxu0
    %v1052 = vadd.f32 %v524, %v1051
    %v1053 = vpop.f32.mrb[0].mxu0
    %1054 = vdwg.mxu0
    %v1055 = vmax.f32 %v801, 0.0
    %v1056 = vmax.f32 %v804, 0.0
    %v1057 = vmax.f32 %v809, 0.0
    %v1058 = vmax.f32 %v812, 0.0
    %v1059 = vmax.f32 %v817, 0.0
    %v1060 = vmax.f32 %v820, 0.0
    %v1061 = vmax.f32 %v825, 0.0
    %v1062 = vmax.f32 %v828, 0.0
    %v1063 = vmax.f32 %v833, 0.0
    %v1064 = vmax.f32 %v836, 0.0
    %v1065 = vmax.f32 %v841, 0.0
    %v1066 = vmax.f32 %v844, 0.0
    %v1067 = vmax.f32 %v849, 0.0
    %v1068 = vmax.f32 %v852, 0.0
    %v1069 = vmax.f32 %v857, 0.0
    %v1070 = vmax.f32 %v860, 0.0
    %v1071 = vmax.f32 %v865, 0.0
    %v1072 = vmax.f32 %v868, 0.0
    %v1073 = vmax.f32 %v873, 0.0
    %v1074 = vmax.f32 %v876, 0.0
    %v1075 = vmax.f32 %v881, 0.0
    %v1076 = vmax.f32 %v884, 0.0
    %v1077 = vmax.f32 %v889, 0.0
    %v1078 = vmax.f32 %v892, 0.0
    %v1079 = vmax.f32 %v897, 0.0
    %v1080 = vmax.f32 %v900, 0.0
    %v1081 = vmax.f32 %v905, 0.0
    %v1082 = vmax.f32 %v908, 0.0
    %v1083 = vmax.f32 %v913, 0.0
    %v1084 = vmax.f32 %v916, 0.0
    %v1085 = vmax.f32 %v921, 0.0
    %v1086 = vmax.f32 %v924, 0.0
    %v1087 = vmax.f32 %v929, 0.0
    %v1088 = vmax.f32 %v932, 0.0
    %v1089 = vmax.f32 %v937, 0.0
    %v1090 = vmax.f32 %v940, 0.0
    %v1091 = vmax.f32 %v945, 0.0
    %v1092 = vmax.f32 %v948, 0.0
    %v1093 = vmax.f32 %v953, 0.0
    %v1094 = vmax.f32 %v956, 0.0
    %v1095 = vmax.f32 %v961, 0.0
    %v1096 = vmax.f32 %v964, 0.0
    %v1097 = vmax.f32 %v969, 0.0
    %v1098 = vmax.f32 %v972, 0.0
    %v1099 = vmax.f32 %v977, 0.0
    %v1100 = vmax.f32 %v980, 0.0
    %v1101 = vmax.f32 %v985, 0.0
    %v1102 = vmax.f32 %v988, 0.0
    %v1103 = vmax.f32 %v993, 0.0
    %v1104 = vmax.f32 %v996, 0.0
    %v1105 = vmax.f32 %v1001, 0.0
    %v1106 = vmax.f32 %v1004, 0.0
    %v1107 = vmax.f32 %v1009, 0.0
    %v1108 = vmax.f32 %v1012, 0.0
    %v1109 = vmax.f32 %v1017, 0.0
    %v1110 = vmax.f32 %v1020, 0.0
    %v1111 = vmax.f32 %v1025, 0.0
    %v1112 = vmax.f32 %v1028, 0.0
    %v1113 = vmax.f32 %v1033, 0.0
    %v1114 = vmax.f32 %v1036, 0.0
    %v1115 = vmax.f32 %v1041, 0.0
    %v1116 = vmax.f32 %v1044, 0.0
    %v1117 = vmax.f32 %v1049, 0.0
    %v1118 = vmax.f32 %v1052, 0.0
    %v1119 = vpack.c.bf16 %v1056, %v1055
    %v1120 = vpack.c.bf16 %v1058, %v1057
    %v1121 = vpack.c.bf16 %v1060, %v1059
    %v1122 = vpack.c.bf16 %v1062, %v1061
    %v1123 = vpack.c.bf16 %v1064, %v1063
    %v1124 = vpack.c.bf16 %v1066, %v1065
    %v1125 = vpack.c.bf16 %v1068, %v1067
    %v1126 = vpack.c.bf16 %v1070, %v1069
    %v1127 = vpack.c.bf16 %v1072, %v1071
    %v1128 = vpack.c.bf16 %v1074, %v1073
    %v1129 = vpack.c.bf16 %v1076, %v1075
    %v1130 = vpack.c.bf16 %v1078, %v1077
    %v1131 = vpack.c.bf16 %v1080, %v1079
    %v1132 = vpack.c.bf16 %v1082, %v1081
    %v1133 = vpack.c.bf16 %v1084, %v1083
    %v1134 = vpack.c.bf16 %v1086, %v1085
    %v1135 = vpack.c.bf16 %v1088, %v1087
    %v1136 = vpack.c.bf16 %v1090, %v1089
    %v1137 = vpack.c.bf16 %v1092, %v1091
    %v1138 = vpack.c.bf16 %v1094, %v1093
    %v1139 = vpack.c.bf16 %v1096, %v1095
    %v1140 = vpack.c.bf16 %v1098, %v1097
    %v1141 = vpack.c.bf16 %v1100, %v1099
    %v1142 = vpack.c.bf16 %v1102, %v1101
    %v1143 = vpack.c.bf16 %v1104, %v1103
    %v1144 = vpack.c.bf16 %v1106, %v1105
    %v1145 = vpack.c.bf16 %v1108, %v1107
    %v1146 = vpack.c.bf16 %v1110, %v1109
    %v1147 = vpack.c.bf16 %v1112, %v1111
    %v1148 = vpack.c.bf16 %v1114, %v1113
    %v1149 = vpack.c.bf16 %v1116, %v1115
    %v1150 = vpack.c.bf16 %v1118, %v1117
    %v1151 = vld [vmem:[%s3] sm:$0xff]
    %v1152 = vld [vmem:[%s3 + $0x8] sm:$0xff]
    %v1153 = vld [vmem:[%s3 + $0x10] sm:$0xff]
    %v1154 = vld [vmem:[%s3 + $0x18] sm:$0xff]
    %v1155 = vld [vmem:[%s3 + $0x20] sm:$0xff]
    %v1156 = vld [vmem:[%s3 + $0x28] sm:$0xff]
    %v1157 = vld [vmem:[%s3 + $0x30] sm:$0xff]
    %v1158 = vld [vmem:[%s3 + $0x38] sm:$0xff]
    %v1159 = vld [vmem:[%s3 + $0x40] sm:$0xff]
    %v1160 = vld [vmem:[%s3 + $0x48] sm:$0xff]
    %v1161 = vld [vmem:[%s3 + $0x50] sm:$0xff]
    %v1162 = vld [vmem:[%s3 + $0x58] sm:$0xff]
    %v1163 = vld [vmem:[%s3 + $0x60] sm:$0xff]
    %v1164 = vld [vmem:[%s3 + $0x68] sm:$0xff]
    %v1165 = vld [vmem:[%s3 + $0x70] sm:$0xff]
    %v1166 = vld [vmem:[%s3 + $0x78] sm:$0xff]
    %v1167 = vld [vmem:[%s3 + $0x80] sm:$0xff]
    %v1168 = vld [vmem:[%s3 + $0x88] sm:$0xff]
    %v1169 = vld [vmem:[%s3 + $0x90] sm:$0xff]
    %v1170 = vld [vmem:[%s3 + $0x98] sm:$0xff]
    %v1171 = vld [vmem:[%s3 + $0xa0] sm:$0xff]
    %v1172 = vld [vmem:[%s3 + $0xa8] sm:$0xff]
    %v1173 = vld [vmem:[%s3 + $0xb0] sm:$0xff]
    %v1174 = vld [vmem:[%s3 + $0xb8] sm:$0xff]
    %v1175 = vld [vmem:[%s3 + $0xc0] sm:$0xff]
    %v1176 = vld [vmem:[%s3 + $0xc8] sm:$0xff]
    %v1177 = vld [vmem:[%s3 + $0xd0] sm:$0xff]
    %v1178 = vld [vmem:[%s3 + $0xd8] sm:$0xff]
    %v1179 = vld [vmem:[%s3 + $0xe0] sm:$0xff]
    %v1180 = vld [vmem:[%s3 + $0xe8] sm:$0xff]
    %v1181 = vld [vmem:[%s3 + $0xf0] sm:$0xff]
    %v1182 = vld [vmem:[%s3 + $0xf8] sm:$0xff]
    %v1183 = vld [vmem:[%s3 + $0x100] sm:$0xff]
    %v1184 = vld [vmem:[%s3 + $0x108] sm:$0xff]
    %v1185 = vld [vmem:[%s3 + $0x110] sm:$0xff]
    %v1186 = vld [vmem:[%s3 + $0x118] sm:$0xff]
    %v1187 = vld [vmem:[%s3 + $0x120] sm:$0xff]
    %v1188 = vld [vmem:[%s3 + $0x128] sm:$0xff]
    %v1189 = vld [vmem:[%s3 + $0x130] sm:$0xff]
    %v1190 = vld [vmem:[%s3 + $0x138] sm:$0xff]
    %v1191 = vld [vmem:[%s3 + $0x140] sm:$0xff]
    %v1192 = vld [vmem:[%s3 + $0x148] sm:$0xff]
    %v1193 = vld [vmem:[%s3 + $0x150] sm:$0xff]
    %v1194 = vld [vmem:[%s3 + $0x158] sm:$0xff]
    %v1195 = vld [vmem:[%s3 + $0x160] sm:$0xff]
    %v1196 = vld [vmem:[%s3 + $0x168] sm:$0xff]
    %v1197 = vld [vmem:[%s3 + $0x170] sm:$0xff]
    %v1198 = vld [vmem:[%s3 + $0x178] sm:$0xff]
    %v1199 = vld [vmem:[%s3 + $0x180] sm:$0xff]
    %v1200 = vld [vmem:[%s3 + $0x188] sm:$0xff]
    %v1201 = vld [vmem:[%s3 + $0x190] sm:$0xff]
    %v1202 = vld [vmem:[%s3 + $0x198] sm:$0xff]
    %v1203 = vld [vmem:[%s3 + $0x1a0] sm:$0xff]
    %v1204 = vld [vmem:[%s3 + $0x1a8] sm:$0xff]
    %v1205 = vld [vmem:[%s3 + $0x1b0] sm:$0xff]
    %v1206 = vld [vmem:[%s3 + $0x1b8] sm:$0xff]
    %v1207 = vld [vmem:[%s3 + $0x1c0] sm:$0xff]
    %v1208 = vld [vmem:[%s3 + $0x1c8] sm:$0xff]
    %v1209 = vld [vmem:[%s3 + $0x1d0] sm:$0xff]
    %v1210 = vld [vmem:[%s3 + $0x1d8] sm:$0xff]
    %v1211 = vld [vmem:[%s3 + $0x1e0] sm:$0xff]
    %v1212 = vld [vmem:[%s3 + $0x1e8] sm:$0xff]
    %v1213 = vld [vmem:[%s3 + $0x1f0] sm:$0xff]
    %v1214 = vld [vmem:[%s3 + $0x1f8] sm:$0xff]
    %v1215 = vld [vmem:[%s3 + $0x200] sm:$0xff]
    %v1216 = vld [vmem:[%s3 + $0x208] sm:$0xff]
    %v1217 = vld [vmem:[%s3 + $0x210] sm:$0xff]
    %v1218 = vld [vmem:[%s3 + $0x218] sm:$0xff]
    %v1219 = vld [vmem:[%s3 + $0x220] sm:$0xff]
    %v1220 = vld [vmem:[%s3 + $0x228] sm:$0xff]
    %v1221 = vld [vmem:[%s3 + $0x230] sm:$0xff]
    %v1222 = vld [vmem:[%s3 + $0x238] sm:$0xff]
    %v1223 = vld [vmem:[%s3 + $0x240] sm:$0xff]
    %v1224 = vld [vmem:[%s3 + $0x248] sm:$0xff]
    %v1225 = vld [vmem:[%s3 + $0x250] sm:$0xff]
    %v1226 = vld [vmem:[%s3 + $0x258] sm:$0xff]
    %v1227 = vld [vmem:[%s3 + $0x260] sm:$0xff]
    %v1228 = vld [vmem:[%s3 + $0x268] sm:$0xff]
    %v1229 = vld [vmem:[%s3 + $0x270] sm:$0xff]
    %v1230 = vld [vmem:[%s3 + $0x278] sm:$0xff]
    %v1231 = vld [vmem:[%s3 + $0x280] sm:$0xff]
    %v1232 = vld [vmem:[%s3 + $0x288] sm:$0xff]
    %v1233 = vld [vmem:[%s3 + $0x290] sm:$0xff]
    %v1234 = vld [vmem:[%s3 + $0x298] sm:$0xff]
    %v1235 = vld [vmem:[%s3 + $0x2a0] sm:$0xff]
    %v1236 = vld [vmem:[%s3 + $0x2a8] sm:$0xff]
    %v1237 = vld [vmem:[%s3 + $0x2b0] sm:$0xff]
    %v1238 = vld [vmem:[%s3 + $0x2b8] sm:$0xff]
    %v1239 = vld [vmem:[%s3 + $0x2c0] sm:$0xff]
    %v1240 = vld [vmem:[%s3 + $0x2c8] sm:$0xff]
    %v1241 = vld [vmem:[%s3 + $0x2d0] sm:$0xff]
    %v1242 = vld [vmem:[%s3 + $0x2d8] sm:$0xff]
    %v1243 = vld [vmem:[%s3 + $0x2e0] sm:$0xff]
    %v1244 = vld [vmem:[%s3 + $0x2e8] sm:$0xff]
    %v1245 = vld [vmem:[%s3 + $0x2f0] sm:$0xff]
    %v1246 = vld [vmem:[%s3 + $0x2f8] sm:$0xff]
    %v1247 = vld [vmem:[%s3 + $0x300] sm:$0xff]
    %v1248 = vld [vmem:[%s3 + $0x308] sm:$0xff]
    %v1249 = vld [vmem:[%s3 + $0x310] sm:$0xff]
    %v1250 = vld [vmem:[%s3 + $0x318] sm:$0xff]
    %v1251 = vld [vmem:[%s3 + $0x320] sm:$0xff]
    %v1252 = vld [vmem:[%s3 + $0x328] sm:$0xff]
    %v1253 = vld [vmem:[%s3 + $0x330] sm:$0xff]
    %v1254 = vld [vmem:[%s3 + $0x338] sm:$0xff]
    %v1255 = vld [vmem:[%s3 + $0x340] sm:$0xff]
    %v1256 = vld [vmem:[%s3 + $0x348] sm:$0xff]
    %v1257 = vld [vmem:[%s3 + $0x350] sm:$0xff]
    %v1258 = vld [vmem:[%s3 + $0x358] sm:$0xff]
    %v1259 = vld [vmem:[%s3 + $0x360] sm:$0xff]
    %v1260 = vld [vmem:[%s3 + $0x368] sm:$0xff]
    %v1261 = vld [vmem:[%s3 + $0x370] sm:$0xff]
    %v1262 = vld [vmem:[%s3 + $0x378] sm:$0xff]
    %v1263 = vld [vmem:[%s3 + $0x380] sm:$0xff]
    %v1264 = vld [vmem:[%s3 + $0x388] sm:$0xff]
    %v1265 = vld [vmem:[%s3 + $0x390] sm:$0xff]
    %v1266 = vld [vmem:[%s3 + $0x398] sm:$0xff]
    %v1267 = vld [vmem:[%s3 + $0x3a0] sm:$0xff]
    %v1268 = vld [vmem:[%s3 + $0x3a8] sm:$0xff]
    %v1269 = vld [vmem:[%s3 + $0x3b0] sm:$0xff]
    %v1270 = vld [vmem:[%s3 + $0x3b8] sm:$0xff]
    %v1271 = vld [vmem:[%s3 + $0x3c0] sm:$0xff]
    %v1272 = vld [vmem:[%s3 + $0x3c8] sm:$0xff]
    %v1273 = vld [vmem:[%s3 + $0x3d0] sm:$0xff]
    %v1274 = vld [vmem:[%s3 + $0x3d8] sm:$0xff]
    %v1275 = vld [vmem:[%s3 + $0x3e0] sm:$0xff]
    %v1276 = vld [vmem:[%s3 + $0x3e8] sm:$0xff]
    %v1277 = vld [vmem:[%s3 + $0x3f0] sm:$0xff]
    %v1278 = vld [vmem:[%s3 + $0x3f8] sm:$0xff]
    %v1279 = vld [vmem:[%s4] sm:$0xff]
    %v1280 = vld [vmem:[%s4 + $0x8] sm:$0xff]
    %v1281 = vld [vmem:[%s4 + $0x10] sm:$0xff]
    %v1282 = vld [vmem:[%s4 + $0x18] sm:$0xff]
    %v1283 = vld [vmem:[%s4 + $0x20] sm:$0xff]
    %v1284 = vld [vmem:[%s4 + $0x28] sm:$0xff]
    %v1285 = vld [vmem:[%s4 + $0x30] sm:$0xff]
    %v1286 = vld [vmem:[%s4 + $0x38] sm:$0xff]
    %v1287 = vld [vmem:[%s4 + $0x40] sm:$0xff]
    %v1288 = vld [vmem:[%s4 + $0x48] sm:$0xff]
    %v1289 = vld [vmem:[%s4 + $0x50] sm:$0xff]
    %v1290 = vld [vmem:[%s4 + $0x58] sm:$0xff]
    %v1291 = vld [vmem:[%s4 + $0x60] sm:$0xff]
    %v1292 = vld [vmem:[%s4 + $0x68] sm:$0xff]
    %v1293 = vld [vmem:[%s4 + $0x70] sm:$0xff]
    %v1294 = vld [vmem:[%s4 + $0x78] sm:$0xff]
    %v1295 = vld [vmem:[%s4 + $0x80] sm:$0xff]
    %v1296 = vld [vmem:[%s4 + $0x88] sm:$0xff]
    %v1297 = vld [vmem:[%s4 + $0x90] sm:$0xff]
    %v1298 = vld [vmem:[%s4 + $0x98] sm:$0xff]
    %v1299 = vld [vmem:[%s4 + $0xa0] sm:$0xff]
    %v1300 = vld [vmem:[%s4 + $0xa8] sm:$0xff]
    %v1301 = vld [vmem:[%s4 + $0xb0] sm:$0xff]
    %v1302 = vld [vmem:[%s4 + $0xb8] sm:$0xff]
    %v1303 = vld [vmem:[%s4 + $0xc0] sm:$0xff]
    %v1304 = vld [vmem:[%s4 + $0xc8] sm:$0xff]
    %v1305 = vld [vmem:[%s4 + $0xd0] sm:$0xff]
    %v1306 = vld [vmem:[%s4 + $0xd8] sm:$0xff]
    %v1307 = vld [vmem:[%s4 + $0xe0] sm:$0xff]
    %v1308 = vld [vmem:[%s4 + $0xe8] sm:$0xff]
    %v1309 = vld [vmem:[%s4 + $0xf0] sm:$0xff]
    %v1310 = vld [vmem:[%s4 + $0xf8] sm:$0xff]
    %v1311 = vld [vmem:[%s4 + $0x100] sm:$0xff]
    %v1312 = vld [vmem:[%s4 + $0x108] sm:$0xff]
    %v1313 = vld [vmem:[%s4 + $0x110] sm:$0xff]
    %v1314 = vld [vmem:[%s4 + $0x118] sm:$0xff]
    %v1315 = vld [vmem:[%s4 + $0x120] sm:$0xff]
    %v1316 = vld [vmem:[%s4 + $0x128] sm:$0xff]
    %v1317 = vld [vmem:[%s4 + $0x130] sm:$0xff]
    %v1318 = vld [vmem:[%s4 + $0x138] sm:$0xff]
    %v1319 = vld [vmem:[%s4 + $0x140] sm:$0xff]
    %v1320 = vld [vmem:[%s4 + $0x148] sm:$0xff]
    %v1321 = vld [vmem:[%s4 + $0x150] sm:$0xff]
    %v1322 = vld [vmem:[%s4 + $0x158] sm:$0xff]
    %v1323 = vld [vmem:[%s4 + $0x160] sm:$0xff]
    %v1324 = vld [vmem:[%s4 + $0x168] sm:$0xff]
    %v1325 = vld [vmem:[%s4 + $0x170] sm:$0xff]
    %v1326 = vld [vmem:[%s4 + $0x178] sm:$0xff]
    %v1327 = vld [vmem:[%s4 + $0x180] sm:$0xff]
    %v1328 = vld [vmem:[%s4 + $0x188] sm:$0xff]
    %v1329 = vld [vmem:[%s4 + $0x190] sm:$0xff]
    %v1330 = vld [vmem:[%s4 + $0x198] sm:$0xff]
    %v1331 = vld [vmem:[%s4 + $0x1a0] sm:$0xff]
    %v1332 = vld [vmem:[%s4 + $0x1a8] sm:$0xff]
    %v1333 = vld [vmem:[%s4 + $0x1b0] sm:$0xff]
    %v1334 = vld [vmem:[%s4 + $0x1b8] sm:$0xff]
    %v1335 = vld [vmem:[%s4 + $0x1c0] sm:$0xff]
    %v1336 = vld [vmem:[%s4 + $0x1c8] sm:$0xff]
    %v1337 = vld [vmem:[%s4 + $0x1d0] sm:$0xff]
    %v1338 = vld [vmem:[%s4 + $0x1d8] sm:$0xff]
    %v1339 = vld [vmem:[%s4 + $0x1e0] sm:$0xff]
    %v1340 = vld [vmem:[%s4 + $0x1e8] sm:$0xff]
    %v1341 = vld [vmem:[%s4 + $0x1f0] sm:$0xff]
    %v1342 = vld [vmem:[%s4 + $0x1f8] sm:$0xff]
    %1344 = vset.pattern.permute.xlu0 0
    %1345 = vperm.xlu0 %1344, %v1279
    %v1346 = vpop.permute.xlu0 %1345
    %1349 = vset.pattern.permute.xlu0 0
    %1350 = vperm.xlu0 %1349, %v1280
    %v1351 = vpop.permute.xlu0 %1350
    %1354 = vset.pattern.permute.xlu0 0
    %1355 = vperm.xlu0 %1354, %v1281
    %v1356 = vpop.permute.xlu0 %1355
    %1359 = vset.pattern.permute.xlu0 0
    %1360 = vperm.xlu0 %1359, %v1282
    %v1361 = vpop.permute.xlu0 %1360
    %1364 = vset.pattern.permute.xlu0 0
    %1365 = vperm.xlu0 %1364, %v1283
    %v1366 = vpop.permute.xlu0 %1365
    %1369 = vset.pattern.permute.xlu0 0
    %1370 = vperm.xlu0 %1369, %v1284
    %v1371 = vpop.permute.xlu0 %1370
    %1374 = vset.pattern.permute.xlu0 0
    %1375 = vperm.xlu0 %1374, %v1285
    %v1376 = vpop.permute.xlu0 %1375
    %1379 = vset.pattern.permute.xlu0 0
    %1380 = vperm.xlu0 %1379, %v1286
    %v1381 = vpop.permute.xlu0 %1380
    %1384 = vset.pattern.permute.xlu0 0
    %1385 = vperm.xlu0 %1384, %v1287
    %v1386 = vpop.permute.xlu0 %1385
    %1389 = vset.pattern.permute.xlu0 0
    %1390 = vperm.xlu0 %1389, %v1288
    %v1391 = vpop.permute.xlu0 %1390
    %1394 = vset.pattern.permute.xlu0 0
    %1395 = vperm.xlu0 %1394, %v1289
    %v1396 = vpop.permute.xlu0 %1395
    %1399 = vset.pattern.permute.xlu0 0
    %1400 = vperm.xlu0 %1399, %v1290
    %v1401 = vpop.permute.xlu0 %1400
    %1404 = vset.pattern.permute.xlu0 0
    %1405 = vperm.xlu0 %1404, %v1291
    %v1406 = vpop.permute.xlu0 %1405
    %1409 = vset.pattern.permute.xlu0 0
    %1410 = vperm.xlu0 %1409, %v1292
    %v1411 = vpop.permute.xlu0 %1410
    %1414 = vset.pattern.permute.xlu0 0
    %1415 = vperm.xlu0 %1414, %v1293
    %v1416 = vpop.permute.xlu0 %1415
    %1419 = vset.pattern.permute.xlu0 0
    %1420 = vperm.xlu0 %1419, %v1294
    %v1421 = vpop.permute.xlu0 %1420
    %1424 = vset.pattern.permute.xlu0 0
    %1425 = vperm.xlu0 %1424, %v1295
    %v1426 = vpop.permute.xlu0 %1425
    %1429 = vset.pattern.permute.xlu0 0
    %1430 = vperm.xlu0 %1429, %v1296
    %v1431 = vpop.permute.xlu0 %1430
    %1434 = vset.pattern.permute.xlu0 0
    %1435 = vperm.xlu0 %1434, %v1297
    %v1436 = vpop.permute.xlu0 %1435
    %1439 = vset.pattern.permute.xlu0 0
    %1440 = vperm.xlu0 %1439, %v1298
    %v1441 = vpop.permute.xlu0 %1440
    %1444 = vset.pattern.permute.xlu0 0
    %1445 = vperm.xlu0 %1444, %v1299
    %v1446 = vpop.permute.xlu0 %1445
    %1449 = vset.pattern.permute.xlu0 0
    %1450 = vperm.xlu0 %1449, %v1300
    %v1451 = vpop.permute.xlu0 %1450
    %1454 = vset.pattern.permute.xlu0 0
    %1455 = vperm.xlu0 %1454, %v1301
    %v1456 = vpop.permute.xlu0 %1455
    %1459 = vset.pattern.permute.xlu0 0
    %1460 = vperm.xlu0 %1459, %v1302
    %v1461 = vpop.permute.xlu0 %1460
    %1464 = vset.pattern.permute.xlu0 0
    %1465 = vperm.xlu0 %1464, %v1303
    %v1466 = vpop.permute.xlu0 %1465
    %1469 = vset.pattern.permute.xlu0 0
    %1470 = vperm.xlu0 %1469, %v1304
    %v1471 = vpop.permute.xlu0 %1470
    %1474 = vset.pattern.permute.xlu0 0
    %1475 = vperm.xlu0 %1474, %v1305
    %v1476 = vpop.permute.xlu0 %1475
    %1479 = vset.pattern.permute.xlu0 0
    %1480 = vperm.xlu0 %1479, %v1306
    %v1481 = vpop.permute.xlu0 %1480
    %1484 = vset.pattern.permute.xlu0 0
    %1485 = vperm.xlu0 %1484, %v1307
    %v1486 = vpop.permute.xlu0 %1485
    %1489 = vset.pattern.permute.xlu0 0
    %1490 = vperm.xlu0 %1489, %v1308
    %v1491 = vpop.permute.xlu0 %1490
    %1494 = vset.pattern.permute.xlu0 0
    %1495 = vperm.xlu0 %1494, %v1309
    %v1496 = vpop.permute.xlu0 %1495
    %1499 = vset.pattern.permute.xlu0 0
    %1500 = vperm.xlu0 %1499, %v1310
    %v1501 = vpop.permute.xlu0 %1500
    %1504 = vset.pattern.permute.xlu0 0
    %1505 = vperm.xlu0 %1504, %v1311
    %v1506 = vpop.permute.xlu0 %1505
    %1509 = vset.pattern.permute.xlu0 0
    %1510 = vperm.xlu0 %1509, %v1312
    %v1511 = vpop.permute.xlu0 %1510
    %1514 = vset.pattern.permute.xlu0 0
    %1515 = vperm.xlu0 %1514, %v1313
    %v1516 = vpop.permute.xlu0 %1515
    %1519 = vset.pattern.permute.xlu0 0
    %1520 = vperm.xlu0 %1519, %v1314
    %v1521 = vpop.permute.xlu0 %1520
    %1524 = vset.pattern.permute.xlu0 0
    %1525 = vperm.xlu0 %1524, %v1315
    %v1526 = vpop.permute.xlu0 %1525
    %1529 = vset.pattern.permute.xlu0 0
    %1530 = vperm.xlu0 %1529, %v1316
    %v1531 = vpop.permute.xlu0 %1530
    %1534 = vset.pattern.permute.xlu0 0
    %1535 = vperm.xlu0 %1534, %v1317
    %v1536 = vpop.permute.xlu0 %1535
    %1539 = vset.pattern.permute.xlu0 0
    %1540 = vperm.xlu0 %1539, %v1318
    %v1541 = vpop.permute.xlu0 %1540
    %1544 = vset.pattern.permute.xlu0 0
    %1545 = vperm.xlu0 %1544, %v1319
    %v1546 = vpop.permute.xlu0 %1545
    %1549 = vset.pattern.permute.xlu0 0
    %1550 = vperm.xlu0 %1549, %v1320
    %v1551 = vpop.permute.xlu0 %1550
    %1554 = vset.pattern.permute.xlu0 0
    %1555 = vperm.xlu0 %1554, %v1321
    %v1556 = vpop.permute.xlu0 %1555
    %1559 = vset.pattern.permute.xlu0 0
    %1560 = vperm.xlu0 %1559, %v1322
    %v1561 = vpop.permute.xlu0 %1560
    %1564 = vset.pattern.permute.xlu0 0
    %1565 = vperm.xlu0 %1564, %v1323
    %v1566 = vpop.permute.xlu0 %1565
    %1569 = vset.pattern.permute.xlu0 0
    %1570 = vperm.xlu0 %1569, %v1324
    %v1571 = vpop.permute.xlu0 %1570
    %1574 = vset.pattern.permute.xlu0 0
    %1575 = vperm.xlu0 %1574, %v1325
    %v1576 = vpop.permute.xlu0 %1575
    %1579 = vset.pattern.permute.xlu0 0
    %1580 = vperm.xlu0 %1579, %v1326
    %v1581 = vpop.permute.xlu0 %1580
    %1584 = vset.pattern.permute.xlu0 0
    %1585 = vperm.xlu0 %1584, %v1327
    %v1586 = vpop.permute.xlu0 %1585
    %1589 = vset.pattern.permute.xlu0 0
    %1590 = vperm.xlu0 %1589, %v1328
    %v1591 = vpop.permute.xlu0 %1590
    %1594 = vset.pattern.permute.xlu0 0
    %1595 = vperm.xlu0 %1594, %v1329
    %v1596 = vpop.permute.xlu0 %1595
    %1599 = vset.pattern.permute.xlu0 0
    %1600 = vperm.xlu0 %1599, %v1330
    %v1601 = vpop.permute.xlu0 %1600
    %1604 = vset.pattern.permute.xlu0 0
    %1605 = vperm.xlu0 %1604, %v1331
    %v1606 = vpop.permute.xlu0 %1605
    %1609 = vset.pattern.permute.xlu0 0
    %1610 = vperm.xlu0 %1609, %v1332
    %v1611 = vpop.permute.xlu0 %1610
    %1614 = vset.pattern.permute.xlu0 0
    %1615 = vperm.xlu0 %1614, %v1333
    %v1616 = vpop.permute.xlu0 %1615
    %1619 = vset.pattern.permute.xlu0 0
    %1620 = vperm.xlu0 %1619, %v1334
    %v1621 = vpop.permute.xlu0 %1620
    %1624 = vset.pattern.permute.xlu0 0
    %1625 = vperm.xlu0 %1624, %v1335
    %v1626 = vpop.permute.xlu0 %1625
    %1629 = vset.pattern.permute.xlu0 0
    %1630 = vperm.xlu0 %1629, %v1336
    %v1631 = vpop.permute.xlu0 %1630
    %1634 = vset.pattern.permute.xlu0 0
    %1635 = vperm.xlu0 %1634, %v1337
    %v1636 = vpop.permute.xlu0 %1635
    %1639 = vset.pattern.permute.xlu0 0
    %1640 = vperm.xlu0 %1639, %v1338
    %v1641 = vpop.permute.xlu0 %1640
    %1644 = vset.pattern.permute.xlu0 0
    %1645 = vperm.xlu0 %1644, %v1339
    %v1646 = vpop.permute.xlu0 %1645
    %1649 = vset.pattern.permute.xlu0 0
    %1650 = vperm.xlu0 %1649, %v1340
    %v1651 = vpop.permute.xlu0 %1650
    %1654 = vset.pattern.permute.xlu0 0
    %1655 = vperm.xlu0 %1654, %v1341
    %v1656 = vpop.permute.xlu0 %1655
    %1659 = vset.pattern.permute.xlu0 0
    %1660 = vperm.xlu0 %1659, %v1342
    %v1661 = vpop.permute.xlu0 %1660
    %v1791 = vunpack.c.l.b16 %v1151
    %v1792 = vunpack.c.h.b16 %v1151
    %v1793 = vunpack.c.l.b16 %v1152
    %v1794 = vunpack.c.h.b16 %v1152
    %v1795 = vunpack.c.l.b16 %v1153
    %v1796 = vunpack.c.h.b16 %v1153
    %v1797 = vunpack.c.l.b16 %v1154
    %v1798 = vunpack.c.h.b16 %v1154
    %v1799 = vunpack.c.l.b16 %v1155
    %v1800 = vunpack.c.h.b16 %v1155
    %v1801 = vunpack.c.l.b16 %v1156
    %v1802 = vunpack.c.h.b16 %v1156
    %v1803 = vunpack.c.l.b16 %v1157
    %v1804 = vunpack.c.h.b16 %v1157
    %v1805 = vunpack.c.l.b16 %v1158
    %v1806 = vunpack.c.h.b16 %v1158
    %v1807 = vunpack.c.l.b16 %v1159
    %v1808 = vunpack.c.h.b16 %v1159
    %v1809 = vunpack.c.l.b16 %v1160
    %v1810 = vunpack.c.h.b16 %v1160
    %v1811 = vunpack.c.l.b16 %v1161
    %v1812 = vunpack.c.h.b16 %v1161
    %v1813 = vunpack.c.l.b16 %v1162
    %v1814 = vunpack.c.h.b16 %v1162
    %v1815 = vunpack.c.l.b16 %v1163
    %v1816 = vunpack.c.h.b16 %v1163
    %v1817 = vunpack.c.l.b16 %v1164
    %v1818 = vunpack.c.h.b16 %v1164
    %v1819 = vunpack.c.l.b16 %v1165
    %v1820 = vunpack.c.h.b16 %v1165
    %v1821 = vunpack.c.l.b16 %v1166
    %v1822 = vunpack.c.h.b16 %v1166
    %v1823 = vunpack.c.l.b16 %v1167
    %v1824 = vunpack.c.h.b16 %v1167
    %v1825 = vunpack.c.l.b16 %v1168
    %v1826 = vunpack.c.h.b16 %v1168
    %v1827 = vunpack.c.l.b16 %v1169
    %v1828 = vunpack.c.h.b16 %v1169
    %v1829 = vunpack.c.l.b16 %v1170
    %v1830 = vunpack.c.h.b16 %v1170
    %v1831 = vunpack.c.l.b16 %v1171
    %v1832 = vunpack.c.h.b16 %v1171
    %v1833 = vunpack.c.l.b16 %v1172
    %v1834 = vunpack.c.h.b16 %v1172
    %v1835 = vunpack.c.l.b16 %v1173
    %v1836 = vunpack.c.h.b16 %v1173
    %v1837 = vunpack.c.l.b16 %v1174
    %v1838 = vunpack.c.h.b16 %v1174
    %v1839 = vunpack.c.l.b16 %v1175
    %v1840 = vunpack.c.h.b16 %v1175
    %v1841 = vunpack.c.l.b16 %v1176
    %v1842 = vunpack.c.h.b16 %v1176
    %v1843 = vunpack.c.l.b16 %v1177
    %v1844 = vunpack.c.h.b16 %v1177
    %v1845 = vunpack.c.l.b16 %v1178
    %v1846 = vunpack.c.h.b16 %v1178
    %v1847 = vunpack.c.l.b16 %v1179
    %v1848 = vunpack.c.h.b16 %v1179
    %v1849 = vunpack.c.l.b16 %v1180
    %v1850 = vunpack.c.h.b16 %v1180
    %v1851 = vunpack.c.l.b16 %v1181
    %v1852 = vunpack.c.h.b16 %v1181
    %v1853 = vunpack.c.l.b16 %v1182
    %v1854 = vunpack.c.h.b16 %v1182
    %v1855 = vunpack.c.l.b16 %v1183
    %v1856 = vunpack.c.h.b16 %v1183
    %v1857 = vunpack.c.l.b16 %v1184
    %v1858 = vunpack.c.h.b16 %v1184
    %v1859 = vunpack.c.l.b16 %v1185
    %v1860 = vunpack.c.h.b16 %v1185
    %v1861 = vunpack.c.l.b16 %v1186
    %v1862 = vunpack.c.h.b16 %v1186
    %v1863 = vunpack.c.l.b16 %v1187
    %v1864 = vunpack.c.h.b16 %v1187
    %v1865 = vunpack.c.l.b16 %v1188
    %v1866 = vunpack.c.h.b16 %v1188
    %v1867 = vunpack.c.l.b16 %v1189
    %v1868 = vunpack.c.h.b16 %v1189
    %v1869 = vunpack.c.l.b16 %v1190
    %v1870 = vunpack.c.h.b16 %v1190
    %v1871 = vunpack.c.l.b16 %v1191
    %v1872 = vunpack.c.h.b16 %v1191
    %v1873 = vunpack.c.l.b16 %v1192
    %v1874 = vunpack.c.h.b16 %v1192
    %v1875 = vunpack.c.l.b16 %v1193
    %v1876 = vunpack.c.h.b16 %v1193
    %v1877 = vunpack.c.l.b16 %v1194
    %v1878 = vunpack.c.h.b16 %v1194
    %v1879 = vunpack.c.l.b16 %v1195
    %v1880 = vunpack.c.h.b16 %v1195
    %v1881 = vunpack.c.l.b16 %v1196
    %v1882 = vunpack.c.h.b16 %v1196
    %v1883 = vunpack.c.l.b16 %v1197
    %v1884 = vunpack.c.h.b16 %v1197
    %v1885 = vunpack.c.l.b16 %v1198
    %v1886 = vunpack.c.h.b16 %v1198
    %v1887 = vunpack.c.l.b16 %v1199
    %v1888 = vunpack.c.h.b16 %v1199
    %v1889 = vunpack.c.l.b16 %v1200
    %v1890 = vunpack.c.h.b16 %v1200
    %v1891 = vunpack.c.l.b16 %v1201
    %v1892 = vunpack.c.h.b16 %v1201
    %v1893 = vunpack.c.l.b16 %v1202
    %v1894 = vunpack.c.h.b16 %v1202
    %v1895 = vunpack.c.l.b16 %v1203
    %v1896 = vunpack.c.h.b16 %v1203
    %v1897 = vunpack.c.l.b16 %v1204
    %v1898 = vunpack.c.h.b16 %v1204
    %v1899 = vunpack.c.l.b16 %v1205
    %v1900 = vunpack.c.h.b16 %v1205
    %v1901 = vunpack.c.l.b16 %v1206
    %v1902 = vunpack.c.h.b16 %v1206
    %v1903 = vunpack.c.l.b16 %v1207
    %v1904 = vunpack.c.h.b16 %v1207
    %v1905 = vunpack.c.l.b16 %v1208
    %v1906 = vunpack.c.h.b16 %v1208
    %v1907 = vunpack.c.l.b16 %v1209
    %v1908 = vunpack.c.h.b16 %v1209
    %v1909 = vunpack.c.l.b16 %v1210
    %v1910 = vunpack.c.h.b16 %v1210
    %v1911 = vunpack.c.l.b16 %v1211
    %v1912 = vunpack.c.h.b16 %v1211
    %v1913 = vunpack.c.l.b16 %v1212
    %v1914 = vunpack.c.h.b16 %v1212
    %v1915 = vunpack.c.l.b16 %v1213
    %v1916 = vunpack.c.h.b16 %v1213
    %v1917 = vunpack.c.l.b16 %v1214
    %v1918 = vunpack.c.h.b16 %v1214
    %v1919 = vunpack.c.l.b16 %v1215
    %v1920 = vunpack.c.h.b16 %v1215
    %v1921 = vunpack.c.l.b16 %v1216
    %v1922 = vunpack.c.h.b16 %v1216
    %v1923 = vunpack.c.l.b16 %v1217
    %v1924 = vunpack.c.h.b16 %v1217
    %v1925 = vunpack.c.l.b16 %v1218
    %v1926 = vunpack.c.h.b16 %v1218
    %v1927 = vunpack.c.l.b16 %v1219
    %v1928 = vunpack.c.h.b16 %v1219
    %v1929 = vunpack.c.l.b16 %v1220
    %v1930 = vunpack.c.h.b16 %v1220
    %v1931 = vunpack.c.l.b16 %v1221
    %v1932 = vunpack.c.h.b16 %v1221
    %v1933 = vunpack.c.l.b16 %v1222
    %v1934 = vunpack.c.h.b16 %v1222
    %v1935 = vunpack.c.l.b16 %v1223
    %v1936 = vunpack.c.h.b16 %v1223
    %v1937 = vunpack.c.l.b16 %v1224
    %v1938 = vunpack.c.h.b16 %v1224
    %v1939 = vunpack.c.l.b16 %v1225
    %v1940 = vunpack.c.h.b16 %v1225
    %v1941 = vunpack.c.l.b16 %v1226
    %v1942 = vunpack.c.h.b16 %v1226
    %v1943 = vunpack.c.l.b16 %v1227
    %v1944 = vunpack.c.h.b16 %v1227
    %v1945 = vunpack.c.l.b16 %v1228
    %v1946 = vunpack.c.h.b16 %v1228
    %v1947 = vunpack.c.l.b16 %v1229
    %v1948 = vunpack.c.h.b16 %v1229
    %v1949 = vunpack.c.l.b16 %v1230
    %v1950 = vunpack.c.h.b16 %v1230
    %v1951 = vunpack.c.l.b16 %v1231
    %v1952 = vunpack.c.h.b16 %v1231
    %v1953 = vunpack.c.l.b16 %v1232
    %v1954 = vunpack.c.h.b16 %v1232
    %v1955 = vunpack.c.l.b16 %v1233
    %v1956 = vunpack.c.h.b16 %v1233
    %v1957 = vunpack.c.l.b16 %v1234
    %v1958 = vunpack.c.h.b16 %v1234
    %v1959 = vunpack.c.l.b16 %v1235
    %v1960 = vunpack.c.h.b16 %v1235
    %v1961 = vunpack.c.l.b16 %v1236
    %v1962 = vunpack.c.h.b16 %v1236
    %v1963 = vunpack.c.l.b16 %v1237
    %v1964 = vunpack.c.h.b16 %v1237
    %v1965 = vunpack.c.l.b16 %v1238
    %v1966 = vunpack.c.h.b16 %v1238
    %v1967 = vunpack.c.l.b16 %v1239
    %v1968 = vunpack.c.h.b16 %v1239
    %v1969 = vunpack.c.l.b16 %v1240
    %v1970 = vunpack.c.h.b16 %v1240
    %v1971 = vunpack.c.l.b16 %v1241
    %v1972 = vunpack.c.h.b16 %v1241
    %v1973 = vunpack.c.l.b16 %v1242
    %v1974 = vunpack.c.h.b16 %v1242
    %v1975 = vunpack.c.l.b16 %v1243
    %v1976 = vunpack.c.h.b16 %v1243
    %v1977 = vunpack.c.l.b16 %v1244
    %v1978 = vunpack.c.h.b16 %v1244
    %v1979 = vunpack.c.l.b16 %v1245
    %v1980 = vunpack.c.h.b16 %v1245
    %v1981 = vunpack.c.l.b16 %v1246
    %v1982 = vunpack.c.h.b16 %v1246
    %v1983 = vunpack.c.l.b16 %v1247
    %v1984 = vunpack.c.h.b16 %v1247
    %v1985 = vunpack.c.l.b16 %v1248
    %v1986 = vunpack.c.h.b16 %v1248
    %v1987 = vunpack.c.l.b16 %v1249
    %v1988 = vunpack.c.h.b16 %v1249
    %v1989 = vunpack.c.l.b16 %v1250
    %v1990 = vunpack.c.h.b16 %v1250
    %v1991 = vunpack.c.l.b16 %v1251
    %v1992 = vunpack.c.h.b16 %v1251
    %v1993 = vunpack.c.l.b16 %v1252
    %v1994 = vunpack.c.h.b16 %v1252
    %v1995 = vunpack.c.l.b16 %v1253
    %v1996 = vunpack.c.h.b16 %v1253
    %v1997 = vunpack.c.l.b16 %v1254
    %v1998 = vunpack.c.h.b16 %v1254
    %v1999 = vunpack.c.l.b16 %v1255
    %v2000 = vunpack.c.h.b16 %v1255
    %v2001 = vunpack.c.l.b16 %v1256
    %v2002 = vunpack.c.h.b16 %v1256
    %v2003 = vunpack.c.l.b16 %v1257
    %v2004 = vunpack.c.h.b16 %v1257
    %v2005 = vunpack.c.l.b16 %v1258
    %v2006 = vunpack.c.h.b16 %v1258
    %v2007 = vunpack.c.l.b16 %v1259
    %v2008 = vunpack.c.h.b16 %v1259
    %v2009 = vunpack.c.l.b16 %v1260
    %v2010 = vunpack.c.h.b16 %v1260
    %v2011 = vunpack.c.l.b16 %v1261
    %v2012 = vunpack.c.h.b16 %v1261
    %v2013 = vunpack.c.l.b16 %v1262
    %v2014 = vunpack.c.h.b16 %v1262
    %v2015 = vunpack.c.l.b16 %v1263
    %v2016 = vunpack.c.h.b16 %v1263
    %v2017 = vunpack.c.l.b16 %v1264
    %v2018 = vunpack.c.h.b16 %v1264
    %v2019 = vunpack.c.l.b16 %v1265
    %v2020 = vunpack.c.h.b16 %v1265
    %v2021 = vunpack.c.l.b16 %v1266
    %v2022 = vunpack.c.h.b16 %v1266
    %v2023 = vunpack.c.l.b16 %v1267
    %v2024 = vunpack.c.h.b16 %v1267
    %v2025 = vunpack.c.l.b16 %v1268
    %v2026 = vunpack.c.h.b16 %v1268
    %v2027 = vunpack.c.l.b16 %v1269
    %v2028 = vunpack.c.h.b16 %v1269
    %v2029 = vunpack.c.l.b16 %v1270
    %v2030 = vunpack.c.h.b16 %v1270
    %v2031 = vunpack.c.l.b16 %v1271
    %v2032 = vunpack.c.h.b16 %v1271
    %v2033 = vunpack.c.l.b16 %v1272
    %v2034 = vunpack.c.h.b16 %v1272
    %v2035 = vunpack.c.l.b16 %v1273
    %v2036 = vunpack.c.h.b16 %v1273
    %v2037 = vunpack.c.l.b16 %v1274
    %v2038 = vunpack.c.h.b16 %v1274
    %v2039 = vunpack.c.l.b16 %v1275
    %v2040 = vunpack.c.h.b16 %v1275
    %v2041 = vunpack.c.l.b16 %v1276
    %v2042 = vunpack.c.h.b16 %v1276
    %v2043 = vunpack.c.l.b16 %v1277
    %v2044 = vunpack.c.h.b16 %v1277
    %v2045 = vunpack.c.l.b16 %v1278
    %v2046 = vunpack.c.h.b16 %v1278
    %v2047 = vpack.c.b16 %v1795, %v1791
    %v2048 = vpack.c.b16 %v1796, %v1792
    %v2049 = vpack.c.b16 %v1797, %v1793
    %v2050 = vpack.c.b16 %v1798, %v1794
    %v2051 = vpack.c.b16 %v1803, %v1799
    %v2052 = vpack.c.b16 %v1804, %v1800
    %v2053 = vpack.c.b16 %v1805, %v1801
    %v2054 = vpack.c.b16 %v1806, %v1802
    %v2055 = vpack.c.b16 %v1811, %v1807
    %v2056 = vpack.c.b16 %v1812, %v1808
    %v2057 = vpack.c.b16 %v1813, %v1809
    %v2058 = vpack.c.b16 %v1814, %v1810
    %v2059 = vpack.c.b16 %v1819, %v1815
    %v2060 = vpack.c.b16 %v1820, %v1816
    %v2061 = vpack.c.b16 %v1821, %v1817
    %v2062 = vpack.c.b16 %v1822, %v1818
    %v2063 = vpack.c.b16 %v1827, %v1823
    %v2064 = vpack.c.b16 %v1828, %v1824
    %v2065 = vpack.c.b16 %v1829, %v1825
    %v2066 = vpack.c.b16 %v1830, %v1826
    %v2067 = vpack.c.b16 %v1835, %v1831
    %v2068 = vpack.c.b16 %v1836, %v1832
    %v2069 = vpack.c.b16 %v1837, %v1833
    %v2070 = vpack.c.b16 %v1838, %v1834
    %v2071 = vpack.c.b16 %v1843, %v1839
    %v2072 = vpack.c.b16 %v1844, %v1840
    %v2073 = vpack.c.b16 %v1845, %v1841
    %v2074 = vpack.c.b16 %v1846, %v1842
    %v2075 = vpack.c.b16 %v1851, %v1847
    %v2076 = vpack.c.b16 %v1852, %v1848
    %v2077 = vpack.c.b16 %v1853, %v1849
    %v2078 = vpack.c.b16 %v1854, %v1850
    %v2079 = vpack.c.b16 %v1859, %v1855
    %v2080 = vpack.c.b16 %v1860, %v1856
    %v2081 = vpack.c.b16 %v1861, %v1857
    %v2082 = vpack.c.b16 %v1862, %v1858
    %v2083 = vpack.c.b16 %v1867, %v1863
    %v2084 = vpack.c.b16 %v1868, %v1864
    %v2085 = vpack.c.b16 %v1869, %v1865
    %v2086 = vpack.c.b16 %v1870, %v1866
    %v2087 = vpack.c.b16 %v1875, %v1871
    %v2088 = vpack.c.b16 %v1876, %v1872
    %v2089 = vpack.c.b16 %v1877, %v1873
    %v2090 = vpack.c.b16 %v1878, %v1874
    %v2091 = vpack.c.b16 %v1883, %v1879
    %v2092 = vpack.c.b16 %v1884, %v1880
    %v2093 = vpack.c.b16 %v1885, %v1881
    %v2094 = vpack.c.b16 %v1886, %v1882
    %v2095 = vpack.c.b16 %v1891, %v1887
    %v2096 = vpack.c.b16 %v1892, %v1888
    %v2097 = vpack.c.b16 %v1893, %v1889
    %v2098 = vpack.c.b16 %v1894, %v1890
    %v2099 = vpack.c.b16 %v1899, %v1895
    %v2100 = vpack.c.b16 %v1900, %v1896
    %v2101 = vpack.c.b16 %v1901, %v1897
    %v2102 = vpack.c.b16 %v1902, %v1898
    %v2103 = vpack.c.b16 %v1907, %v1903
    %v2104 = vpack.c.b16 %v1908, %v1904
    %v2105 = vpack.c.b16 %v1909, %v1905
    %v2106 = vpack.c.b16 %v1910, %v1906
    %v2107 = vpack.c.b16 %v1915, %v1911
    %v2108 = vpack.c.b16 %v1916, %v1912
    %v2109 = vpack.c.b16 %v1917, %v1913
    %v2110 = vpack.c.b16 %v1918, %v1914
    %v2111 = vpack.c.b16 %v1923, %v1919
    %v2112 = vpack.c.b16 %v1924, %v1920
    %v2113 = vpack.c.b16 %v1925, %v1921
    %v2114 = vpack.c.b16 %v1926, %v1922
    %v2115 = vpack.c.b16 %v1931, %v1927
    %v2116 = vpack.c.b16 %v1932, %v1928
    %v2117 = vpack.c.b16 %v1933, %v1929
    %v2118 = vpack.c.b16 %v1934, %v1930
    %v2119 = vpack.c.b16 %v1939, %v1935
    %v2120 = vpack.c.b16 %v1940, %v1936
    %v2121 = vpack.c.b16 %v1941, %v1937
    %v2122 = vpack.c.b16 %v1942, %v1938
    %v2123 = vpack.c.b16 %v1947, %v1943
    %v2124 = vpack.c.b16 %v1948, %v1944
    %v2125 = vpack.c.b16 %v1949, %v1945
    %v2126 = vpack.c.b16 %v1950, %v1946
    %v2127 = vpack.c.b16 %v1955, %v1951
    %v2128 = vpack.c.b16 %v1956, %v1952
    %v2129 = vpack.c.b16 %v1957, %v1953
    %v2130 = vpack.c.b16 %v1958, %v1954
    %v2131 = vpack.c.b16 %v1963, %v1959
    %v2132 = vpack.c.b16 %v1964, %v1960
    %v2133 = vpack.c.b16 %v1965, %v1961
    %v2134 = vpack.c.b16 %v1966, %v1962
    %v2135 = vpack.c.b16 %v1971, %v1967
    %v2136 = vpack.c.b16 %v1972, %v1968
    %v2137 = vpack.c.b16 %v1973, %v1969
    %v2138 = vpack.c.b16 %v1974, %v1970
    %v2139 = vpack.c.b16 %v1979, %v1975
    %v2140 = vpack.c.b16 %v1980, %v1976
    %v2141 = vpack.c.b16 %v1981, %v1977
    %v2142 = vpack.c.b16 %v1982, %v1978
    %v2143 = vpack.c.b16 %v1987, %v1983
    %v2144 = vpack.c.b16 %v1988, %v1984
    %v2145 = vpack.c.b16 %v1989, %v1985
    %v2146 = vpack.c.b16 %v1990, %v1986
    %v2147 = vpack.c.b16 %v1995, %v1991
    %v2148 = vpack.c.b16 %v1996, %v1992
    %v2149 = vpack.c.b16 %v1997, %v1993
    %v2150 = vpack.c.b16 %v1998, %v1994
    %v2151 = vpack.c.b16 %v2003, %v1999
    %v2152 = vpack.c.b16 %v2004, %v2000
    %v2153 = vpack.c.b16 %v2005, %v2001
    %v2154 = vpack.c.b16 %v2006, %v2002
    %v2155 = vpack.c.b16 %v2011, %v2007
    %v2156 = vpack.c.b16 %v2012, %v2008
    %v2157 = vpack.c.b16 %v2013, %v2009
    %v2158 = vpack.c.b16 %v2014, %v2010
    %v2159 = vpack.c.b16 %v2019, %v2015
    %v2160 = vpack.c.b16 %v2020, %v2016
    %v2161 = vpack.c.b16 %v2021, %v2017
    %v2162 = vpack.c.b16 %v2022, %v2018
    %v2163 = vpack.c.b16 %v2027, %v2023
    %v2164 = vpack.c.b16 %v2028, %v2024
    %v2165 = vpack.c.b16 %v2029, %v2025
    %v2166 = vpack.c.b16 %v2030, %v2026
    %v2167 = vpack.c.b16 %v2035, %v2031
    %v2168 = vpack.c.b16 %v2036, %v2032
    %v2169 = vpack.c.b16 %v2037, %v2033
    %v2170 = vpack.c.b16 %v2038, %v2034
    %v2171 = vpack.c.b16 %v2043, %v2039
    %v2172 = vpack.c.b16 %v2044, %v2040
    %v2173 = vpack.c.b16 %v2045, %v2041
    %v2174 = vpack.c.b16 %v2046, %v2042
    %2303 = vmatprep.subr.bf16.mxu0 0
    %2304 = vmatpush1.bf16.msra.mxu0 %v1119
    %2305 = vmatprep.subr.bf16.mxu0 0
    %2306 = vmatpush1.bf16.msra.mxu0 %v1120
    %2307 = vmatprep.subr.bf16.mxu0 0
    %2308 = vmatpush1.bf16.msra.mxu0 %v1121
    %2309 = vmatprep.subr.bf16.mxu0 0
    %2310 = vmatpush1.bf16.msra.mxu0 %v1122
    %2311 = vmatprep.subr.bf16.mxu0 0
    %2312 = vmatpush1.bf16.msra.mxu0 %v1123
    %2313 = vmatprep.subr.bf16.mxu0 0
    %2314 = vmatpush1.bf16.msra.mxu0 %v1124
    %2315 = vmatprep.subr.bf16.mxu0 0
    %2316 = vmatpush1.bf16.msra.mxu0 %v1125
    %2317 = vmatprep.subr.bf16.mxu0 0
    %2318 = vmatpush1.bf16.msra.mxu0 %v1126
    %2319 = vmatprep.subr.bf16.mxu0 0
    %2320 = vmatpush1.bf16.msra.mxu0 %v1127
    %2321 = vmatprep.subr.bf16.mxu0 0
    %2322 = vmatpush1.bf16.msra.mxu0 %v1128
    %2323 = vmatprep.subr.bf16.mxu0 0
    %2324 = vmatpush1.bf16.msra.mxu0 %v1129
    %2325 = vmatprep.subr.bf16.mxu0 0
    %2326 = vmatpush1.bf16.msra.mxu0 %v1130
    %2327 = vmatprep.subr.bf16.mxu0 0
    %2328 = vmatpush1.bf16.msra.mxu0 %v1131
    %2329 = vmatprep.subr.bf16.mxu0 0
    %2330 = vmatpush1.bf16.msra.mxu0 %v1132
    %2331 = vmatprep.subr.bf16.mxu0 0
    %2332 = vmatpush1.bf16.msra.mxu0 %v1133
    %2333 = vmatprep.subr.bf16.mxu0 0
    %2334 = vmatpush1.bf16.msra.mxu0 %v1134
    %2335 = vmatprep.mubr.bf16.mxu0 %v2048
    %2336 = vmatmul.mubr.bf16.gmra.mrb[0].mxu0 %v2047
    %v2337 = vpop.f32.mrb[0].mxu0
    %v2338 = vadd.f32 %v1346, %v2337
    %v2339 = vpop.f32.mrb[0].mxu0
    %v2340 = vpop.f32.mrb[0].mxu0
    %v2341 = vadd.f32 %v1351, %v2340
    %v2342 = vpop.f32.mrb[0].mxu0
    %2343 = vmatprep.mubr.bf16.mxu0 %v2052
    %2344 = vmatmul.mubr.bf16.gmra.mrb[0].mxu0 %v2051
    %v2345 = vpop.f32.mrb[0].mxu0
    %v2346 = vadd.f32 %v1356, %v2345
    %v2347 = vpop.f32.mrb[0].mxu0
    %v2348 = vpop.f32.mrb[0].mxu0
    %v2349 = vadd.f32 %v1361, %v2348
    %v2350 = vpop.f32.mrb[0].mxu0
    %2351 = vmatprep.mubr.bf16.mxu0 %v2056
    %2352 = vmatmul.mubr.bf16.gmra.mrb[0].mxu0 %v2055
    %v2353 = vpop.f32.mrb[0].mxu0
    %v2354 = vadd.f32 %v1366, %v2353
    %v2355 = vpop.f32.mrb[0].mxu0
    %v2356 = vpop.f32.mrb[0].mxu0
    %v2357 = vadd.f32 %v1371, %v2356
    %v2358 = vpop.f32.mrb[0].mxu0
    %2359 = vmatprep.mubr.bf16.mxu0 %v2060
    %2360 = vmatmul.mubr.bf16.gmra.mrb[0].mxu0 %v2059
    %v2361 = vpop.f32.mrb[0].mxu0
    %v2362 = vadd.f32 %v1376, %v2361
    %v2363 = vpop.f32.mrb[0].mxu0
    %v2364 = vpop.f32.mrb[0].mxu0
    %v2365 = vadd.f32 %v1381, %v2364
    %v2366 = vpop.f32.mrb[0].mxu0
    %2367 = vmatprep.mubr.bf16.mxu0 %v2064
    %2368 = vmatmul.mubr.bf16.gmra.mrb[0].mxu0 %v2063
    %v2369 = vpop.f32.mrb[0].mxu0
    %v2370 = vadd.f32 %v1386, %v2369
    %v2371 = vpop.f32.mrb[0].mxu0
    %v2372 = vpop.f32.mrb[0].mxu0
    %v2373 = vadd.f32 %v1391, %v2372
    %v2374 = vpop.f32.mrb[0].mxu0
    %2375 = vmatprep.mubr.bf16.mxu0 %v2068
    %2376 = vmatmul.mubr.bf16.gmra.mrb[0].mxu0 %v2067
    %v2377 = vpop.f32.mrb[0].mxu0
    %v2378 = vadd.f32 %v1396, %v2377
    %v2379 = vpop.f32.mrb[0].mxu0
    %v2380 = vpop.f32.mrb[0].mxu0
    %v2381 = vadd.f32 %v1401, %v2380
    %v2382 = vpop.f32.mrb[0].mxu0
    %2383 = vmatprep.mubr.bf16.mxu0 %v2072
    %2384 = vmatmul.mubr.bf16.gmra.mrb[0].mxu0 %v2071
    %v2385 = vpop.f32.mrb[0].mxu0
    %v2386 = vadd.f32 %v1406, %v2385
    %v2387 = vpop.f32.mrb[0].mxu0
    %v2388 = vpop.f32.mrb[0].mxu0
    %v2389 = vadd.f32 %v1411, %v2388
    %v2390 = vpop.f32.mrb[0].mxu0
    %2391 = vmatprep.mubr.bf16.mxu0 %v2076
    %2392 = vmatmul.mubr.bf16.gmra.mrb[0].mxu0 %v2075
    %v2393 = vpop.f32.mrb[0].mxu0
    %v2394 = vadd.f32 %v1416, %v2393
    %v2395 = vpop.f32.mrb[0].mxu0
    %v2396 = vpop.f32.mrb[0].mxu0
    %v2397 = vadd.f32 %v1421, %v2396
    %v2398 = vpop.f32.mrb[0].mxu0
    %2399 = vmatprep.mubr.bf16.mxu0 %v2080
    %2400 = vmatmul.mubr.bf16.gmra.mrb[0].mxu0 %v2079
    %v2401 = vpop.f32.mrb[0].mxu0
    %v2402 = vadd.f32 %v1426, %v2401
    %v2403 = vpop.f32.mrb[0].mxu0
    %v2404 = vpop.f32.mrb[0].mxu0
    %v2405 = vadd.f32 %v1431, %v2404
    %v2406 = vpop.f32.mrb[0].mxu0
    %2407 = vmatprep.mubr.bf16.mxu0 %v2084
    %2408 = vmatmul.mubr.bf16.gmra.mrb[0].mxu0 %v2083
    %v2409 = vpop.f32.mrb[0].mxu0
    %v2410 = vadd.f32 %v1436, %v2409
    %v2411 = vpop.f32.mrb[0].mxu0
    %v2412 = vpop.f32.mrb[0].mxu0
    %v2413 = vadd.f32 %v1441, %v2412
    %v2414 = vpop.f32.mrb[0].mxu0
    %2415 = vmatprep.mubr.bf16.mxu0 %v2088
    %2416 = vmatmul.mubr.bf16.gmra.mrb[0].mxu0 %v2087
    %v2417 = vpop.f32.mrb[0].mxu0
    %v2418 = vadd.f32 %v1446, %v2417
    %v2419 = vpop.f32.mrb[0].mxu0
    %v2420 = vpop.f32.mrb[0].mxu0
    %v2421 = vadd.f32 %v1451, %v2420
    %v2422 = vpop.f32.mrb[0].mxu0
    %2423 = vmatprep.mubr.bf16.mxu0 %v2092
    %2424 = vmatmul.mubr.bf16.gmra.mrb[0].mxu0 %v2091
    %v2425 = vpop.f32.mrb[0].mxu0
    %v2426 = vadd.f32 %v1456, %v2425
    %v2427 = vpop.f32.mrb[0].mxu0
    %v2428 = vpop.f32.mrb[0].mxu0
    %v2429 = vadd.f32 %v1461, %v2428
    %v2430 = vpop.f32.mrb[0].mxu0
    %2431 = vmatprep.mubr.bf16.mxu0 %v2096
    %2432 = vmatmul.mubr.bf16.gmra.mrb[0].mxu0 %v2095
    %v2433 = vpop.f32.mrb[0].mxu0
    %v2434 = vadd.f32 %v1466, %v2433
    %v2435 = vpop.f32.mrb[0].mxu0
    %v2436 = vpop.f32.mrb[0].mxu0
    %v2437 = vadd.f32 %v1471, %v2436
    %v2438 = vpop.f32.mrb[0].mxu0
    %2439 = vmatprep.mubr.bf16.mxu0 %v2100
    %2440 = vmatmul.mubr.bf16.gmra.mrb[0].mxu0 %v2099
    %v2441 = vpop.f32.mrb[0].mxu0
    %v2442 = vadd.f32 %v1476, %v2441
    %v2443 = vpop.f32.mrb[0].mxu0
    %v2444 = vpop.f32.mrb[0].mxu0
    %v2445 = vadd.f32 %v1481, %v2444
    %v2446 = vpop.f32.mrb[0].mxu0
    %2447 = vmatprep.mubr.bf16.mxu0 %v2104
    %2448 = vmatmul.mubr.bf16.gmra.mrb[0].mxu0 %v2103
    %v2449 = vpop.f32.mrb[0].mxu0
    %v2450 = vadd.f32 %v1486, %v2449
    %v2451 = vpop.f32.mrb[0].mxu0
    %v2452 = vpop.f32.mrb[0].mxu0
    %v2453 = vadd.f32 %v1491, %v2452
    %v2454 = vpop.f32.mrb[0].mxu0
    %2455 = vmatprep.mubr.bf16.mxu0 %v2108
    %2456 = vmatmul.mubr.bf16.gmra.mrb[0].mxu0 %v2107
    %v2457 = vpop.f32.mrb[0].mxu0
    %v2458 = vadd.f32 %v1496, %v2457
    %v2459 = vpop.f32.mrb[0].mxu0
    %v2460 = vpop.f32.mrb[0].mxu0
    %v2461 = vadd.f32 %v1501, %v2460
    %v2462 = vpop.f32.mrb[0].mxu0
    %2463 = vmatprep.mubr.bf16.mxu0 %v2112
    %2464 = vmatmul.mubr.bf16.gmra.mrb[0].mxu0 %v2111
    %v2465 = vpop.f32.mrb[0].mxu0
    %v2466 = vadd.f32 %v1506, %v2465
    %v2467 = vpop.f32.mrb[0].mxu0
    %v2468 = vpop.f32.mrb[0].mxu0
    %v2469 = vadd.f32 %v1511, %v2468
    %v2470 = vpop.f32.mrb[0].mxu0
    %2471 = vmatprep.mubr.bf16.mxu0 %v2116
    %2472 = vmatmul.mubr.bf16.gmra.mrb[0].mxu0 %v2115
    %v2473 = vpop.f32.mrb[0].mxu0
    %v2474 = vadd.f32 %v1516, %v2473
    %v2475 = vpop.f32.mrb[0].mxu0
    %v2476 = vpop.f32.mrb[0].mxu0
    %v2477 = vadd.f32 %v1521, %v2476
    %v2478 = vpop.f32.mrb[0].mxu0
    %2479 = vmatprep.mubr.bf16.mxu0 %v2120
    %2480 = vmatmul.mubr.bf16.gmra.mrb[0].mxu0 %v2119
    %v2481 = vpop.f32.mrb[0].mxu0
    %v2482 = vadd.f32 %v1526, %v2481
    %v2483 = vpop.f32.mrb[0].mxu0
    %v2484 = vpop.f32.mrb[0].mxu0
    %v2485 = vadd.f32 %v1531, %v2484
    %v2486 = vpop.f32.mrb[0].mxu0
    %2487 = vmatprep.mubr.bf16.mxu0 %v2124
    %2488 = vmatmul.mubr.bf16.gmra.mrb[0].mxu0 %v2123
    %v2489 = vpop.f32.mrb[0].mxu0
    %v2490 = vadd.f32 %v1536, %v2489
    %v2491 = vpop.f32.mrb[0].mxu0
    %v2492 = vpop.f32.mrb[0].mxu0
    %v2493 = vadd.f32 %v1541, %v2492
    %v2494 = vpop.f32.mrb[0].mxu0
    %2495 = vmatprep.mubr.bf16.mxu0 %v2128
    %2496 = vmatmul.mubr.bf16.gmra.mrb[0].mxu0 %v2127
    %v2497 = vpop.f32.mrb[0].mxu0
    %v2498 = vadd.f32 %v1546, %v2497
    %v2499 = vpop.f32.mrb[0].mxu0
    %v2500 = vpop.f32.mrb[0].mxu0
    %v2501 = vadd.f32 %v1551, %v2500
    %v2502 = vpop.f32.mrb[0].mxu0
    %2503 = vmatprep.mubr.bf16.mxu0 %v2132
    %2504 = vmatmul.mubr.bf16.gmra.mrb[0].mxu0 %v2131
    %v2505 = vpop.f32.mrb[0].mxu0
    %v2506 = vadd.f32 %v1556, %v2505
    %v2507 = vpop.f32.mrb[0].mxu0
    %v2508 = vpop.f32.mrb[0].mxu0
    %v2509 = vadd.f32 %v1561, %v2508
    %v2510 = vpop.f32.mrb[0].mxu0
    %2511 = vmatprep.mubr.bf16.mxu0 %v2136
    %2512 = vmatmul.mubr.bf16.gmra.mrb[0].mxu0 %v2135
    %v2513 = vpop.f32.mrb[0].mxu0
    %v2514 = vadd.f32 %v1566, %v2513
    %v2515 = vpop.f32.mrb[0].mxu0
    %v2516 = vpop.f32.mrb[0].mxu0
    %v2517 = vadd.f32 %v1571, %v2516
    %v2518 = vpop.f32.mrb[0].mxu0
    %2519 = vmatprep.mubr.bf16.mxu0 %v2140
    %2520 = vmatmul.mubr.bf16.gmra.mrb[0].mxu0 %v2139
    %v2521 = vpop.f32.mrb[0].mxu0
    %v2522 = vadd.f32 %v1576, %v2521
    %v2523 = vpop.f32.mrb[0].mxu0
    %v2524 = vpop.f32.mrb[0].mxu0
    %v2525 = vadd.f32 %v1581, %v2524
    %v2526 = vpop.f32.mrb[0].mxu0
    %2527 = vmatprep.mubr.bf16.mxu0 %v2144
    %2528 = vmatmul.mubr.bf16.gmra.mrb[0].mxu0 %v2143
    %v2529 = vpop.f32.mrb[0].mxu0
    %v2530 = vadd.f32 %v1586, %v2529
    %v2531 = vpop.f32.mrb[0].mxu0
    %v2532 = vpop.f32.mrb[0].mxu0
    %v2533 = vadd.f32 %v1591, %v2532
    %v2534 = vpop.f32.mrb[0].mxu0
    %2535 = vmatprep.mubr.bf16.mxu0 %v2148
    %2536 = vmatmul.mubr.bf16.gmra.mrb[0].mxu0 %v2147
    %v2537 = vpop.f32.mrb[0].mxu0
    %v2538 = vadd.f32 %v1596, %v2537
    %v2539 = vpop.f32.mrb[0].mxu0
    %v2540 = vpop.f32.mrb[0].mxu0
    %v2541 = vadd.f32 %v1601, %v2540
    %v2542 = vpop.f32.mrb[0].mxu0
    %2543 = vmatprep.mubr.bf16.mxu0 %v2152
    %2544 = vmatmul.mubr.bf16.gmra.mrb[0].mxu0 %v2151
    %v2545 = vpop.f32.mrb[0].mxu0
    %v2546 = vadd.f32 %v1606, %v2545
    %v2547 = vpop.f32.mrb[0].mxu0
    %v2548 = vpop.f32.mrb[0].mxu0
    %v2549 = vadd.f32 %v1611, %v2548
    %v2550 = vpop.f32.mrb[0].mxu0
    %2551 = vmatprep.mubr.bf16.mxu0 %v2156
    %2552 = vmatmul.mubr.bf16.gmra.mrb[0].mxu0 %v2155
    %v2553 = vpop.f32.mrb[0].mxu0
    %v2554 = vadd.f32 %v1616, %v2553
    %v2555 = vpop.f32.mrb[0].mxu0
    %v2556 = vpop.f32.mrb[0].mxu0
    %v2557 = vadd.f32 %v1621, %v2556
    %v2558 = vpop.f32.mrb[0].mxu0
    %2559 = vmatprep.mubr.bf16.mxu0 %v2160
    %2560 = vmatmul.mubr.bf16.gmra.mrb[0].mxu0 %v2159
    %v2561 = vpop.f32.mrb[0].mxu0
    %v2562 = vadd.f32 %v1626, %v2561
    %v2563 = vpop.f32.mrb[0].mxu0
    %v2564 = vpop.f32.mrb[0].mxu0
    %v2565 = vadd.f32 %v1631, %v2564
    %v2566 = vpop.f32.mrb[0].mxu0
    %2567 = vmatprep.mubr.bf16.mxu0 %v2164
    %2568 = vmatmul.mubr.bf16.gmra.mrb[0].mxu0 %v2163
    %v2569 = vpop.f32.mrb[0].mxu0
    %v2570 = vadd.f32 %v1636, %v2569
    %v2571 = vpop.f32.mrb[0].mxu0
    %v2572 = vpop.f32.mrb[0].mxu0
    %v2573 = vadd.f32 %v1641, %v2572
    %v2574 = vpop.f32.mrb[0].mxu0
    %2575 = vmatprep.mubr.bf16.mxu0 %v2168
    %2576 = vmatmul.mubr.bf16.gmra.mrb[0].mxu0 %v2167
    %v2577 = vpop.f32.mrb[0].mxu0
    %v2578 = vadd.f32 %v1646, %v2577
    %v2579 = vpop.f32.mrb[0].mxu0
    %v2580 = vpop.f32.mrb[0].mxu0
    %v2581 = vadd.f32 %v1651, %v2580
    %v2582 = vpop.f32.mrb[0].mxu0
    %2583 = vmatprep.mubr.bf16.mxu0 %v2172
    %2584 = vmatmul.mubr.bf16.gmra.mrb[0].mxu0 %v2171
    %v2585 = vpop.f32.mrb[0].mxu0
    %v2586 = vadd.f32 %v1656, %v2585
    %v2587 = vpop.f32.mrb[0].mxu0
    %v2588 = vpop.f32.mrb[0].mxu0
    %v2589 = vadd.f32 %v1661, %v2588
    %v2590 = vpop.f32.mrb[0].mxu0
    %2591 = vdwg.mxu0
    %2592 = vmatprep.subr.bf16.mxu0 0
    %2593 = vmatpush1.bf16.msra.mxu0 %v1135
    %2594 = vmatprep.subr.bf16.mxu0 0
    %2595 = vmatpush1.bf16.msra.mxu0 %v1136
    %2596 = vmatprep.subr.bf16.mxu0 0
    %2597 = vmatpush1.bf16.msra.mxu0 %v1137
    %2598 = vmatprep.subr.bf16.mxu0 0
    %2599 = vmatpush1.bf16.msra.mxu0 %v1138
    %2600 = vmatprep.subr.bf16.mxu0 0
    %2601 = vmatpush1.bf16.msra.mxu0 %v1139
    %2602 = vmatprep.subr.bf16.mxu0 0
    %2603 = vmatpush1.bf16.msra.mxu0 %v1140
    %2604 = vmatprep.subr.bf16.mxu0 0
    %2605 = vmatpush1.bf16.msra.mxu0 %v1141
    %2606 = vmatprep.subr.bf16.mxu0 0
    %2607 = vmatpush1.bf16.msra.mxu0 %v1142
    %2608 = vmatprep.subr.bf16.mxu0 0
    %2609 = vmatpush1.bf16.msra.mxu0 %v1143
    %2610 = vmatprep.subr.bf16.mxu0 0
    %2611 = vmatpush1.bf16.msra.mxu0 %v1144
    %2612 = vmatprep.subr.bf16.mxu0 0
    %2613 = vmatpush1.bf16.msra.mxu0 %v1145
    %2614 = vmatprep.subr.bf16.mxu0 0
    %2615 = vmatpush1.bf16.msra.mxu0 %v1146
    %2616 = vmatprep.subr.bf16.mxu0 0
    %2617 = vmatpush1.bf16.msra.mxu0 %v1147
    %2618 = vmatprep.subr.bf16.mxu0 0
    %2619 = vmatpush1.bf16.msra.mxu0 %v1148
    %2620 = vmatprep.subr.bf16.mxu0 0
    %2621 = vmatpush1.bf16.msra.mxu0 %v1149
    %2622 = vmatprep.subr.bf16.mxu0 0
    %2623 = vmatpush1.bf16.msra.mxu0 %v1150
    %2624 = vmatprep.mubr.bf16.mxu0 %v2050
    %2625 = vmatmul.mubr.bf16.gmra.mrb[0].mxu0 %v2049
    %v2626 = vpop.f32.mrb[0].mxu0
    %v2627 = vadd.f32 %v2338, %v2626
    %v2628 = vpop.f32.mrb[0].mxu0
    %v2629 = vpop.f32.mrb[0].mxu0
    %v2630 = vadd.f32 %v2341, %v2629
    %v2631 = vpop.f32.mrb[0].mxu0
    %2632 = vmatprep.mubr.bf16.mxu0 %v2054
    %2633 = vmatmul.mubr.bf16.gmra.mrb[0].mxu0 %v2053
    %v2634 = vpop.f32.mrb[0].mxu0
    %v2635 = vadd.f32 %v2346, %v2634
    %v2636 = vpop.f32.mrb[0].mxu0
    %v2637 = vpop.f32.mrb[0].mxu0
    %v2638 = vadd.f32 %v2349, %v2637
    %v2639 = vpop.f32.mrb[0].mxu0
    %2640 = vmatprep.mubr.bf16.mxu0 %v2058
    %2641 = vmatmul.mubr.bf16.gmra.mrb[0].mxu0 %v2057
    %v2642 = vpop.f32.mrb[0].mxu0
    %v2643 = vadd.f32 %v2354, %v2642
    %v2644 = vpop.f32.mrb[0].mxu0
    %v2645 = vpop.f32.mrb[0].mxu0
    %v2646 = vadd.f32 %v2357, %v2645
    %v2647 = vpop.f32.mrb[0].mxu0
    %2648 = vmatprep.mubr.bf16.mxu0 %v2062
    %2649 = vmatmul.mubr.bf16.gmra.mrb[0].mxu0 %v2061
    %v2650 = vpop.f32.mrb[0].mxu0
    %v2651 = vadd.f32 %v2362, %v2650
    %v2652 = vpop.f32.mrb[0].mxu0
    %v2653 = vpop.f32.mrb[0].mxu0
    %v2654 = vadd.f32 %v2365, %v2653
    %v2655 = vpop.f32.mrb[0].mxu0
    %2656 = vmatprep.mubr.bf16.mxu0 %v2066
    %2657 = vmatmul.mubr.bf16.gmra.mrb[0].mxu0 %v2065
    %v2658 = vpop.f32.mrb[0].mxu0
    %v2659 = vadd.f32 %v2370, %v2658
    %v2660 = vpop.f32.mrb[0].mxu0
    %v2661 = vpop.f32.mrb[0].mxu0
    %v2662 = vadd.f32 %v2373, %v2661
    %v2663 = vpop.f32.mrb[0].mxu0
    %2664 = vmatprep.mubr.bf16.mxu0 %v2070
    %2665 = vmatmul.mubr.bf16.gmra.mrb[0].mxu0 %v2069
    %v2666 = vpop.f32.mrb[0].mxu0
    %v2667 = vadd.f32 %v2378, %v2666
    %v2668 = vpop.f32.mrb[0].mxu0
    %v2669 = vpop.f32.mrb[0].mxu0
    %v2670 = vadd.f32 %v2381, %v2669
    %v2671 = vpop.f32.mrb[0].mxu0
    %2672 = vmatprep.mubr.bf16.mxu0 %v2074
    %2673 = vmatmul.mubr.bf16.gmra.mrb[0].mxu0 %v2073
    %v2674 = vpop.f32.mrb[0].mxu0
    %v2675 = vadd.f32 %v2386, %v2674
    %v2676 = vpop.f32.mrb[0].mxu0
    %v2677 = vpop.f32.mrb[0].mxu0
    %v2678 = vadd.f32 %v2389, %v2677
    %v2679 = vpop.f32.mrb[0].mxu0
    %2680 = vmatprep.mubr.bf16.mxu0 %v2078
    %2681 = vmatmul.mubr.bf16.gmra.mrb[0].mxu0 %v2077
    %v2682 = vpop.f32.mrb[0].mxu0
    %v2683 = vadd.f32 %v2394, %v2682
    %v2684 = vpop.f32.mrb[0].mxu0
    %v2685 = vpop.f32.mrb[0].mxu0
    %v2686 = vadd.f32 %v2397, %v2685
    %v2687 = vpop.f32.mrb[0].mxu0
    %2688 = vmatprep.mubr.bf16.mxu0 %v2082
    %2689 = vmatmul.mubr.bf16.gmra.mrb[0].mxu0 %v2081
    %v2690 = vpop.f32.mrb[0].mxu0
    %v2691 = vadd.f32 %v2402, %v2690
    %v2692 = vpop.f32.mrb[0].mxu0
    %v2693 = vpop.f32.mrb[0].mxu0
    %v2694 = vadd.f32 %v2405, %v2693
    %v2695 = vpop.f32.mrb[0].mxu0
    %2696 = vmatprep.mubr.bf16.mxu0 %v2086
    %2697 = vmatmul.mubr.bf16.gmra.mrb[0].mxu0 %v2085
    %v2698 = vpop.f32.mrb[0].mxu0
    %v2699 = vadd.f32 %v2410, %v2698
    %v2700 = vpop.f32.mrb[0].mxu0
    %v2701 = vpop.f32.mrb[0].mxu0
    %v2702 = vadd.f32 %v2413, %v2701
    %v2703 = vpop.f32.mrb[0].mxu0
    %2704 = vmatprep.mubr.bf16.mxu0 %v2090
    %2705 = vmatmul.mubr.bf16.gmra.mrb[0].mxu0 %v2089
    %v2706 = vpop.f32.mrb[0].mxu0
    %v2707 = vadd.f32 %v2418, %v2706
    %v2708 = vpop.f32.mrb[0].mxu0
    %v2709 = vpop.f32.mrb[0].mxu0
    %v2710 = vadd.f32 %v2421, %v2709
    %v2711 = vpop.f32.mrb[0].mxu0
    %2712 = vmatprep.mubr.bf16.mxu0 %v2094
    %2713 = vmatmul.mubr.bf16.gmra.mrb[0].mxu0 %v2093
    %v2714 = vpop.f32.mrb[0].mxu0
    %v2715 = vadd.f32 %v2426, %v2714
    %v2716 = vpop.f32.mrb[0].mxu0
    %v2717 = vpop.f32.mrb[0].mxu0
    %v2718 = vadd.f32 %v2429, %v2717
    %v2719 = vpop.f32.mrb[0].mxu0
    %2720 = vmatprep.mubr.bf16.mxu0 %v2098
    %2721 = vmatmul.mubr.bf16.gmra.mrb[0].mxu0 %v2097
    %v2722 = vpop.f32.mrb[0].mxu0
    %v2723 = vadd.f32 %v2434, %v2722
    %v2724 = vpop.f32.mrb[0].mxu0
    %v2725 = vpop.f32.mrb[0].mxu0
    %v2726 = vadd.f32 %v2437, %v2725
    %v2727 = vpop.f32.mrb[0].mxu0
    %2728 = vmatprep.mubr.bf16.mxu0 %v2102
    %2729 = vmatmul.mubr.bf16.gmra.mrb[0].mxu0 %v2101
    %v2730 = vpop.f32.mrb[0].mxu0
    %v2731 = vadd.f32 %v2442, %v2730
    %v2732 = vpop.f32.mrb[0].mxu0
    %v2733 = vpop.f32.mrb[0].mxu0
    %v2734 = vadd.f32 %v2445, %v2733
    %v2735 = vpop.f32.mrb[0].mxu0
    %2736 = vmatprep.mubr.bf16.mxu0 %v2106
    %2737 = vmatmul.mubr.bf16.gmra.mrb[0].mxu0 %v2105
    %v2738 = vpop.f32.mrb[0].mxu0
    %v2739 = vadd.f32 %v2450, %v2738
    %v2740 = vpop.f32.mrb[0].mxu0
    %v2741 = vpop.f32.mrb[0].mxu0
    %v2742 = vadd.f32 %v2453, %v2741
    %v2743 = vpop.f32.mrb[0].mxu0
    %2744 = vmatprep.mubr.bf16.mxu0 %v2110
    %2745 = vmatmul.mubr.bf16.gmra.mrb[0].mxu0 %v2109
    %v2746 = vpop.f32.mrb[0].mxu0
    %v2747 = vadd.f32 %v2458, %v2746
    %v2748 = vpop.f32.mrb[0].mxu0
    %v2749 = vpop.f32.mrb[0].mxu0
    %v2750 = vadd.f32 %v2461, %v2749
    %v2751 = vpop.f32.mrb[0].mxu0
    %2752 = vmatprep.mubr.bf16.mxu0 %v2114
    %2753 = vmatmul.mubr.bf16.gmra.mrb[0].mxu0 %v2113
    %v2754 = vpop.f32.mrb[0].mxu0
    %v2755 = vadd.f32 %v2466, %v2754
    %v2756 = vpop.f32.mrb[0].mxu0
    %v2757 = vpop.f32.mrb[0].mxu0
    %v2758 = vadd.f32 %v2469, %v2757
    %v2759 = vpop.f32.mrb[0].mxu0
    %2760 = vmatprep.mubr.bf16.mxu0 %v2118
    %2761 = vmatmul.mubr.bf16.gmra.mrb[0].mxu0 %v2117
    %v2762 = vpop.f32.mrb[0].mxu0
    %v2763 = vadd.f32 %v2474, %v2762
    %v2764 = vpop.f32.mrb[0].mxu0
    %v2765 = vpop.f32.mrb[0].mxu0
    %v2766 = vadd.f32 %v2477, %v2765
    %v2767 = vpop.f32.mrb[0].mxu0
    %2768 = vmatprep.mubr.bf16.mxu0 %v2122
    %2769 = vmatmul.mubr.bf16.gmra.mrb[0].mxu0 %v2121
    %v2770 = vpop.f32.mrb[0].mxu0
    %v2771 = vadd.f32 %v2482, %v2770
    %v2772 = vpop.f32.mrb[0].mxu0
    %v2773 = vpop.f32.mrb[0].mxu0
    %v2774 = vadd.f32 %v2485, %v2773
    %v2775 = vpop.f32.mrb[0].mxu0
    %2776 = vmatprep.mubr.bf16.mxu0 %v2126
    %2777 = vmatmul.mubr.bf16.gmra.mrb[0].mxu0 %v2125
    %v2778 = vpop.f32.mrb[0].mxu0
    %v2779 = vadd.f32 %v2490, %v2778
    %v2780 = vpop.f32.mrb[0].mxu0
    %v2781 = vpop.f32.mrb[0].mxu0
    %v2782 = vadd.f32 %v2493, %v2781
    %v2783 = vpop.f32.mrb[0].mxu0
    %2784 = vmatprep.mubr.bf16.mxu0 %v2130
    %2785 = vmatmul.mubr.bf16.gmra.mrb[0].mxu0 %v2129
    %v2786 = vpop.f32.mrb[0].mxu0
    %v2787 = vadd.f32 %v2498, %v2786
    %v2788 = vpop.f32.mrb[0].mxu0
    %v2789 = vpop.f32.mrb[0].mxu0
    %v2790 = vadd.f32 %v2501, %v2789
    %v2791 = vpop.f32.mrb[0].mxu0
    %2792 = vmatprep.mubr.bf16.mxu0 %v2134
    %2793 = vmatmul.mubr.bf16.gmra.mrb[0].mxu0 %v2133
    %v2794 = vpop.f32.mrb[0].mxu0
    %v2795 = vadd.f32 %v2506, %v2794
    %v2796 = vpop.f32.mrb[0].mxu0
    %v2797 = vpop.f32.mrb[0].mxu0
    %v2798 = vadd.f32 %v2509, %v2797
    %v2799 = vpop.f32.mrb[0].mxu0
    %2800 = vmatprep.mubr.bf16.mxu0 %v2138
    %2801 = vmatmul.mubr.bf16.gmra.mrb[0].mxu0 %v2137
    %v2802 = vpop.f32.mrb[0].mxu0
    %v2803 = vadd.f32 %v2514, %v2802
    %v2804 = vpop.f32.mrb[0].mxu0
    %v2805 = vpop.f32.mrb[0].mxu0
    %v2806 = vadd.f32 %v2517, %v2805
    %v2807 = vpop.f32.mrb[0].mxu0
    %2808 = vmatprep.mubr.bf16.mxu0 %v2142
    %2809 = vmatmul.mubr.bf16.gmra.mrb[0].mxu0 %v2141
    %v2810 = vpop.f32.mrb[0].mxu0
    %v2811 = vadd.f32 %v2522, %v2810
    %v2812 = vpop.f32.mrb[0].mxu0
    %v2813 = vpop.f32.mrb[0].mxu0
    %v2814 = vadd.f32 %v2525, %v2813
    %v2815 = vpop.f32.mrb[0].mxu0
    %2816 = vmatprep.mubr.bf16.mxu0 %v2146
    %2817 = vmatmul.mubr.bf16.gmra.mrb[0].mxu0 %v2145
    %v2818 = vpop.f32.mrb[0].mxu0
    %v2819 = vadd.f32 %v2530, %v2818
    %v2820 = vpop.f32.mrb[0].mxu0
    %v2821 = vpop.f32.mrb[0].mxu0
    %v2822 = vadd.f32 %v2533, %v2821
    %v2823 = vpop.f32.mrb[0].mxu0
    %2824 = vmatprep.mubr.bf16.mxu0 %v2150
    %2825 = vmatmul.mubr.bf16.gmra.mrb[0].mxu0 %v2149
    %v2826 = vpop.f32.mrb[0].mxu0
    %v2827 = vadd.f32 %v2538, %v2826
    %v2828 = vpop.f32.mrb[0].mxu0
    %v2829 = vpop.f32.mrb[0].mxu0
    %v2830 = vadd.f32 %v2541, %v2829
    %v2831 = vpop.f32.mrb[0].mxu0
    %2832 = vmatprep.mubr.bf16.mxu0 %v2154
    %2833 = vmatmul.mubr.bf16.gmra.mrb[0].mxu0 %v2153
    %v2834 = vpop.f32.mrb[0].mxu0
    %v2835 = vadd.f32 %v2546, %v2834
    %v2836 = vpop.f32.mrb[0].mxu0
    %v2837 = vpop.f32.mrb[0].mxu0
    %v2838 = vadd.f32 %v2549, %v2837
    %v2839 = vpop.f32.mrb[0].mxu0
    %2840 = vmatprep.mubr.bf16.mxu0 %v2158
    %2841 = vmatmul.mubr.bf16.gmra.mrb[0].mxu0 %v2157
    %v2842 = vpop.f32.mrb[0].mxu0
    %v2843 = vadd.f32 %v2554, %v2842
    %v2844 = vpop.f32.mrb[0].mxu0
    %v2845 = vpop.f32.mrb[0].mxu0
    %v2846 = vadd.f32 %v2557, %v2845
    %v2847 = vpop.f32.mrb[0].mxu0
    %2848 = vmatprep.mubr.bf16.mxu0 %v2162
    %2849 = vmatmul.mubr.bf16.gmra.mrb[0].mxu0 %v2161
    %v2850 = vpop.f32.mrb[0].mxu0
    %v2851 = vadd.f32 %v2562, %v2850
    %v2852 = vpop.f32.mrb[0].mxu0
    %v2853 = vpop.f32.mrb[0].mxu0
    %v2854 = vadd.f32 %v2565, %v2853
    %v2855 = vpop.f32.mrb[0].mxu0
    %2856 = vmatprep.mubr.bf16.mxu0 %v2166
    %2857 = vmatmul.mubr.bf16.gmra.mrb[0].mxu0 %v2165
    %v2858 = vpop.f32.mrb[0].mxu0
    %v2859 = vadd.f32 %v2570, %v2858
    %v2860 = vpop.f32.mrb[0].mxu0
    %v2861 = vpop.f32.mrb[0].mxu0
    %v2862 = vadd.f32 %v2573, %v2861
    %v2863 = vpop.f32.mrb[0].mxu0
    %2864 = vmatprep.mubr.bf16.mxu0 %v2170
    %2865 = vmatmul.mubr.bf16.gmra.mrb[0].mxu0 %v2169
    %v2866 = vpop.f32.mrb[0].mxu0
    %v2867 = vadd.f32 %v2578, %v2866
    %v2868 = vpop.f32.mrb[0].mxu0
    %v2869 = vpop.f32.mrb[0].mxu0
    %v2870 = vadd.f32 %v2581, %v2869
    %v2871 = vpop.f32.mrb[0].mxu0
    %2872 = vmatprep.mubr.bf16.mxu0 %v2174
    %2873 = vmatmul.mubr.bf16.gmra.mrb[0].mxu0 %v2173
    %v2874 = vpop.f32.mrb[0].mxu0
    %v2875 = vadd.f32 %v2586, %v2874
    %v2876 = vpop.f32.mrb[0].mxu0
    %v2877 = vpop.f32.mrb[0].mxu0
    %v2878 = vadd.f32 %v2589, %v2877
    %v2879 = vpop.f32.mrb[0].mxu0
    %2880 = vdwg.mxu0
    %v2881 = vmax.f32 %v2627, 0.0
    %v2882 = vmax.f32 %v2630, 0.0
    %v2883 = vmax.f32 %v2635, 0.0
    %v2884 = vmax.f32 %v2638, 0.0
    %v2885 = vmax.f32 %v2643, 0.0
    %v2886 = vmax.f32 %v2646, 0.0
    %v2887 = vmax.f32 %v2651, 0.0
    %v2888 = vmax.f32 %v2654, 0.0
    %v2889 = vmax.f32 %v2659, 0.0
    %v2890 = vmax.f32 %v2662, 0.0
    %v2891 = vmax.f32 %v2667, 0.0
    %v2892 = vmax.f32 %v2670, 0.0
    %v2893 = vmax.f32 %v2675, 0.0
    %v2894 = vmax.f32 %v2678, 0.0
    %v2895 = vmax.f32 %v2683, 0.0
    %v2896 = vmax.f32 %v2686, 0.0
    %v2897 = vmax.f32 %v2691, 0.0
    %v2898 = vmax.f32 %v2694, 0.0
    %v2899 = vmax.f32 %v2699, 0.0
    %v2900 = vmax.f32 %v2702, 0.0
    %v2901 = vmax.f32 %v2707, 0.0
    %v2902 = vmax.f32 %v2710, 0.0
    %v2903 = vmax.f32 %v2715, 0.0
    %v2904 = vmax.f32 %v2718, 0.0
    %v2905 = vmax.f32 %v2723, 0.0
    %v2906 = vmax.f32 %v2726, 0.0
    %v2907 = vmax.f32 %v2731, 0.0
    %v2908 = vmax.f32 %v2734, 0.0
    %v2909 = vmax.f32 %v2739, 0.0
    %v2910 = vmax.f32 %v2742, 0.0
    %v2911 = vmax.f32 %v2747, 0.0
    %v2912 = vmax.f32 %v2750, 0.0
    %v2913 = vmax.f32 %v2755, 0.0
    %v2914 = vmax.f32 %v2758, 0.0
    %v2915 = vmax.f32 %v2763, 0.0
    %v2916 = vmax.f32 %v2766, 0.0
    %v2917 = vmax.f32 %v2771, 0.0
    %v2918 = vmax.f32 %v2774, 0.0
    %v2919 = vmax.f32 %v2779, 0.0
    %v2920 = vmax.f32 %v2782, 0.0
    %v2921 = vmax.f32 %v2787, 0.0
    %v2922 = vmax.f32 %v2790, 0.0
    %v2923 = vmax.f32 %v2795, 0.0
    %v2924 = vmax.f32 %v2798, 0.0
    %v2925 = vmax.f32 %v2803, 0.0
    %v2926 = vmax.f32 %v2806, 0.0
    %v2927 = vmax.f32 %v2811, 0.0
    %v2928 = vmax.f32 %v2814, 0.0
    %v2929 = vmax.f32 %v2819, 0.0
    %v2930 = vmax.f32 %v2822, 0.0
    %v2931 = vmax.f32 %v2827, 0.0
    %v2932 = vmax.f32 %v2830, 0.0
    %v2933 = vmax.f32 %v2835, 0.0
    %v2934 = vmax.f32 %v2838, 0.0
    %v2935 = vmax.f32 %v2843, 0.0
    %v2936 = vmax.f32 %v2846, 0.0
    %v2937 = vmax.f32 %v2851, 0.0
    %v2938 = vmax.f32 %v2854, 0.0
    %v2939 = vmax.f32 %v2859, 0.0
    %v2940 = vmax.f32 %v2862, 0.0
    %v2941 = vmax.f32 %v2867, 0.0
    %v2942 = vmax.f32 %v2870, 0.0
    %v2943 = vmax.f32 %v2875, 0.0
    %v2944 = vmax.f32 %v2878, 0.0
    %v2945 = vpack.c.bf16 %v2882, %v2881
    %v2946 = vpack.c.bf16 %v2884, %v2883
    %v2947 = vpack.c.bf16 %v2886, %v2885
    %v2948 = vpack.c.bf16 %v2888, %v2887
    %v2949 = vpack.c.bf16 %v2890, %v2889
    %v2950 = vpack.c.bf16 %v2892, %v2891
    %v2951 = vpack.c.bf16 %v2894, %v2893
    %v2952 = vpack.c.bf16 %v2896, %v2895
    %v2953 = vpack.c.bf16 %v2898, %v2897
    %v2954 = vpack.c.bf16 %v2900, %v2899
    %v2955 = vpack.c.bf16 %v2902, %v2901
    %v2956 = vpack.c.bf16 %v2904, %v2903
    %v2957 = vpack.c.bf16 %v2906, %v2905
    %v2958 = vpack.c.bf16 %v2908, %v2907
    %v2959 = vpack.c.bf16 %v2910, %v2909
    %v2960 = vpack.c.bf16 %v2912, %v2911
    %v2961 = vpack.c.bf16 %v2914, %v2913
    %v2962 = vpack.c.bf16 %v2916, %v2915
    %v2963 = vpack.c.bf16 %v2918, %v2917
    %v2964 = vpack.c.bf16 %v2920, %v2919
    %v2965 = vpack.c.bf16 %v2922, %v2921
    %v2966 = vpack.c.bf16 %v2924, %v2923
    %v2967 = vpack.c.bf16 %v2926, %v2925
    %v2968 = vpack.c.bf16 %v2928, %v2927
    %v2969 = vpack.c.bf16 %v2930, %v2929
    %v2970 = vpack.c.bf16 %v2932, %v2931
    %v2971 = vpack.c.bf16 %v2934, %v2933
    %v2972 = vpack.c.bf16 %v2936, %v2935
    %v2973 = vpack.c.bf16 %v2938, %v2937
    %v2974 = vpack.c.bf16 %v2940, %v2939
    %v2975 = vpack.c.bf16 %v2942, %v2941
    %v2976 = vpack.c.bf16 %v2944, %v2943
    %v2977 = vld [vmem:[#allocation5] sm:$0xff]
    %v2978 = vld [vmem:[#allocation5 + $0x8] sm:$0xff]
    %v2979 = vld [vmem:[#allocation5 + $0x10] sm:$0xff]
    %v2980 = vld [vmem:[#allocation5 + $0x18] sm:$0xff]
    %v2981 = vld [vmem:[#allocation5 + $0x20] sm:$0xff]
    %v2982 = vld [vmem:[#allocation5 + $0x28] sm:$0xff]
    %v2983 = vld [vmem:[#allocation5 + $0x30] sm:$0xff]
    %v2984 = vld [vmem:[#allocation5 + $0x38] sm:$0xff]
    %v2985 = vld [vmem:[%s6] sm:$0xff]
    %v2986 = vld [vmem:[%s6 + $0x8] sm:$0xff]
    %v2987 = vld [vmem:[%s6 + $0x10] sm:$0xff]
    %v2988 = vld [vmem:[%s6 + $0x18] sm:$0xff]
    %2990 = vset.pattern.permute.xlu0 0
    %2991 = vperm.xlu0 %2990, %v2985
    %v2992 = vpop.permute.xlu0 %2991
    %2995 = vset.pattern.permute.xlu0 0
    %2996 = vperm.xlu0 %2995, %v2986
    %v2997 = vpop.permute.xlu0 %2996
    %3000 = vset.pattern.permute.xlu0 0
    %3001 = vperm.xlu0 %3000, %v2987
    %v3002 = vpop.permute.xlu0 %3001
    %3005 = vset.pattern.permute.xlu0 0
    %3006 = vperm.xlu0 %3005, %v2988
    %v3007 = vpop.permute.xlu0 %3006
    %v3017 = vunpack.c.l.b16 %v2977
    %v3018 = vunpack.c.h.b16 %v2977
    %v3019 = vunpack.c.l.b16 %v2978
    %v3020 = vunpack.c.h.b16 %v2978
    %v3021 = vunpack.c.l.b16 %v2979
    %v3022 = vunpack.c.h.b16 %v2979
    %v3023 = vunpack.c.l.b16 %v2980
    %v3024 = vunpack.c.h.b16 %v2980
    %v3025 = vunpack.c.l.b16 %v2981
    %v3026 = vunpack.c.h.b16 %v2981
    %v3027 = vunpack.c.l.b16 %v2982
    %v3028 = vunpack.c.h.b16 %v2982
    %v3029 = vunpack.c.l.b16 %v2983
    %v3030 = vunpack.c.h.b16 %v2983
    %v3031 = vunpack.c.l.b16 %v2984
    %v3032 = vunpack.c.h.b16 %v2984
    %v3033 = vpack.c.b16 %v3021, %v3017
    %v3034 = vpack.c.b16 %v3022, %v3018
    %v3035 = vpack.c.b16 %v3023, %v3019
    %v3036 = vpack.c.b16 %v3024, %v3020
    %v3037 = vpack.c.b16 %v3029, %v3025
    %v3038 = vpack.c.b16 %v3030, %v3026
    %v3039 = vpack.c.b16 %v3031, %v3027
    %v3040 = vpack.c.b16 %v3032, %v3028
    %3049 = vmatprep.subr.bf16.mxu0 0
    %3050 = vmatpush1.bf16.msra.mxu0 %v2945
    %3051 = vmatprep.subr.bf16.mxu0 0
    %3052 = vmatpush1.bf16.msra.mxu0 %v2946
    %3053 = vmatprep.subr.bf16.mxu0 0
    %3054 = vmatpush1.bf16.msra.mxu0 %v2947
    %3055 = vmatprep.subr.bf16.mxu0 0
    %3056 = vmatpush1.bf16.msra.mxu0 %v2948
    %3057 = vmatprep.subr.bf16.mxu0 0
    %3058 = vmatpush1.bf16.msra.mxu0 %v2949
    %3059 = vmatprep.subr.bf16.mxu0 0
    %3060 = vmatpush1.bf16.msra.mxu0 %v2950
    %3061 = vmatprep.subr.bf16.mxu0 0
    %3062 = vmatpush1.bf16.msra.mxu0 %v2951
    %3063 = vmatprep.subr.bf16.mxu0 0
    %3064 = vmatpush1.bf16.msra.mxu0 %v2952
    %3065 = vmatprep.subr.bf16.mxu0 0
    %3066 = vmatpush1.bf16.msra.mxu0 %v2953
    %3067 = vmatprep.subr.bf16.mxu0 0
    %3068 = vmatpush1.bf16.msra.mxu0 %v2954
    %3069 = vmatprep.subr.bf16.mxu0 0
    %3070 = vmatpush1.bf16.msra.mxu0 %v2955
    %3071 = vmatprep.subr.bf16.mxu0 0
    %3072 = vmatpush1.bf16.msra.mxu0 %v2956
    %3073 = vmatprep.subr.bf16.mxu0 0
    %3074 = vmatpush1.bf16.msra.mxu0 %v2957
    %3075 = vmatprep.subr.bf16.mxu0 0
    %3076 = vmatpush1.bf16.msra.mxu0 %v2958
    %3077 = vmatprep.subr.bf16.mxu0 0
    %3078 = vmatpush1.bf16.msra.mxu0 %v2959
    %3079 = vmatprep.subr.bf16.mxu0 0
    %3080 = vmatpush1.bf16.msra.mxu0 %v2960
    %3081 = vmatprep.mubr.bf16.mxu0 %v3034
    %3082 = vmatmul.mubr.bf16.gmra.mrb[0].mxu0 %v3033
    %v3083 = vpop.f32.mrb[0].mxu0
    %v3084 = vadd.f32 %v2992, %v3083
    %v3085 = vpop.f32.mrb[0].mxu0
    %v3086 = vpop.f32.mrb[0].mxu0
    %v3087 = vadd.f32 %v2997, %v3086
    %v3088 = vpop.f32.mrb[0].mxu0
    %3089 = vmatprep.mubr.bf16.mxu0 %v3038
    %3090 = vmatmul.mubr.bf16.gmra.mrb[0].mxu0 %v3037
    %v3091 = vpop.f32.mrb[0].mxu0
    %v3092 = vadd.f32 %v3002, %v3091
    %v3093 = vpop.f32.mrb[0].mxu0
    %v3094 = vpop.f32.mrb[0].mxu0
    %v3095 = vadd.f32 %v3007, %v3094
    %v3096 = vpop.f32.mrb[0].mxu0
    %3097 = vdwg.mxu0
    %3098 = vmatprep.subr.bf16.mxu0 0
    %3099 = vmatpush1.bf16.msra.mxu0 %v2961
    %3100 = vmatprep.subr.bf16.mxu0 0
    %3101 = vmatpush1.bf16.msra.mxu0 %v2962
    %3102 = vmatprep.subr.bf16.mxu0 0
    %3103 = vmatpush1.bf16.msra.mxu0 %v2963
    %3104 = vmatprep.subr.bf16.mxu0 0
    %3105 = vmatpush1.bf16.msra.mxu0 %v2964
    %3106 = vmatprep.subr.bf16.mxu0 0
    %3107 = vmatpush1.bf16.msra.mxu0 %v2965
    %3108 = vmatprep.subr.bf16.mxu0 0
    %3109 = vmatpush1.bf16.msra.mxu0 %v2966
    %3110 = vmatprep.subr.bf16.mxu0 0
    %3111 = vmatpush1.bf16.msra.mxu0 %v2967
    %3112 = vmatprep.subr.bf16.mxu0 0
    %3113 = vmatpush1.bf16.msra.mxu0 %v2968
    %3114 = vmatprep.subr.bf16.mxu0 0
    %3115 = vmatpush1.bf16.msra.mxu0 %v2969
    %3116 = vmatprep.subr.bf16.mxu0 0
    %3117 = vmatpush1.bf16.msra.mxu0 %v2970
    %3118 = vmatprep.subr.bf16.mxu0 0
    %3119 = vmatpush1.bf16.msra.mxu0 %v2971
    %3120 = vmatprep.subr.bf16.mxu0 0
    %3121 = vmatpush1.bf16.msra.mxu0 %v2972
    %3122 = vmatprep.subr.bf16.mxu0 0
    %3123 = vmatpush1.bf16.msra.mxu0 %v2973
    %3124 = vmatprep.subr.bf16.mxu0 0
    %3125 = vmatpush1.bf16.msra.mxu0 %v2974
    %3126 = vmatprep.subr.bf16.mxu0 0
    %3127 = vmatpush1.bf16.msra.mxu0 %v2975
    %3128 = vmatprep.subr.bf16.mxu0 0
    %3129 = vmatpush1.bf16.msra.mxu0 %v2976
    %3130 = vmatprep.mubr.bf16.mxu0 %v3036
    %3131 = vmatmul.mubr.bf16.gmra.mrb[0].mxu0 %v3035
    %v3132 = vpop.f32.mrb[0].mxu0
    %v3133 = vadd.f32 %v3084, %v3132
    %v3134 = vpop.f32.mrb[0].mxu0
    %v3135 = vpop.f32.mrb[0].mxu0
    %v3136 = vadd.f32 %v3087, %v3135
    %v3137 = vpop.f32.mrb[0].mxu0
    %3138 = vmatprep.mubr.bf16.mxu0 %v3040
    %3139 = vmatmul.mubr.bf16.gmra.mrb[0].mxu0 %v3039
    %v3140 = vpop.f32.mrb[0].mxu0
    %v3141 = vadd.f32 %v3092, %v3140
    %v3142 = vpop.f32.mrb[0].mxu0
    %v3143 = vpop.f32.mrb[0].mxu0
    %v3144 = vadd.f32 %v3095, %v3143
    %v3145 = vpop.f32.mrb[0].mxu0
    %3146 = vdwg.mxu0
    %v3147 = vmax.f32 %v3133, 0.0
    %v3148 = vmax.f32 %v3136, 0.0
    %v3149 = vmax.f32 %v3141, 0.0
    %v3150 = vmax.f32 %v3144, 0.0
    %v3151 = vpack.c.bf16 %v3148, %v3147
    %v3152 = vpack.c.bf16 %v3150, %v3149
    %v3153 = vld [vmem:[%s7] sm:$0xf]
    %v3154 = vld [vmem:[%s7 + $0x4] sm:$0xf]
    %v3155 = vld [vmem:[%s8] sm:$0xff]
    %v3156 = vld [vmem:[%s8 + $0x8] sm:$0xff]
    %3158 = vset.pattern.permute.xlu0 0
    %3159 = vperm.xlu0 %3158, %v3155
    %v3160 = vpop.permute.xlu0 %3159
    %3163 = vset.pattern.permute.xlu0 0
    %3164 = vperm.xlu0 %3163, %v3156
    %v3165 = vpop.permute.xlu0 %3164
    %v3169 = vunpack.c.l.b16 %v3153
    %v3170 = vunpack.c.l.b16 %v3154
    %v3171 = vpack.c.b16 %v3170, %v3169
    %vm3172 = vcmask 261120
    %v3174 = vsel %vm3172, %v3171, 0
    %3176 = vmatprep.subr.bf16.mxu0 0
    %3177 = vmatpush1.bf16.msra.mxu0 %v3151
    %3178 = vmatprep.subr.bf16.mxu0 0
    %3179 = vmatpush1.bf16.msra.mxu0 %v3152
    %3180 = vmatprep.subr.bf16.mxu0 0
    %3181 = vmatpush1.bf16.msra.mxu0 0
    %3182 = vmatprep.subr.bf16.mxu0 0
    %3183 = vmatpush1.bf16.msra.mxu0 0
    %3184 = vmatprep.subr.bf16.mxu0 0
    %3185 = vmatpush1.bf16.msra.mxu0 0
    %3186 = vmatprep.subr.bf16.mxu0 0
    %3187 = vmatpush1.bf16.msra.mxu0 0
    %3188 = vmatprep.subr.bf16.mxu0 0
    %3189 = vmatpush1.bf16.msra.mxu0 0
    %3190 = vmatprep.subr.bf16.mxu0 0
    %3191 = vmatpush1.bf16.msra.mxu0 0
    %3192 = vmatprep.subr.bf16.mxu0 0
    %3193 = vmatpush1.bf16.msra.mxu0 0
    %3194 = vmatprep.subr.bf16.mxu0 0
    %3195 = vmatpush1.bf16.msra.mxu0 0
    %3196 = vmatprep.subr.bf16.mxu0 0
    %3197 = vmatpush1.bf16.msra.mxu0 0
    %3198 = vmatprep.subr.bf16.mxu0 0
    %3199 = vmatpush1.bf16.msra.mxu0 0
    %3200 = vmatprep.subr.bf16.mxu0 0
    %3201 = vmatpush1.bf16.msra.mxu0 0
    %3202 = vmatprep.subr.bf16.mxu0 0
    %3203 = vmatpush1.bf16.msra.mxu0 0
    %3204 = vmatprep.subr.bf16.mxu0 0
    %3205 = vmatpush1.bf16.msra.mxu0 0
    %3206 = vmatprep.subr.bf16.mxu0 0
    %3207 = vmatpush1.bf16.msra.mxu0 0
    %3208 = vmatprep.mubr.bf16.mxu0 0
    %3209 = vmatmul.mubr.bf16.gmra.mrb[0].mxu0 %v3174
    %v3210 = vpop.f32.mrb[0].mxu0
    %v3211 = vadd.f32 %v3160, %v3210
    %v3212 = vpop.f32.mrb[0].mxu0
    %v3213 = vpop.f32.mrb[0].mxu0
    %v3214 = vadd.f32 %v3165, %v3213
    %v3215 = vpop.f32.mrb[0].mxu0
    %3216 = vdwg.mxu0
    %3217 = vst [vmem:[#allocation7] sm:$0xff] %v3211
    %3218 = vst [vmem:[#allocation7 + $0x8] sm:$0xff] %v3214
    // Predicated region
    $region46: #{tpu_custom_call.1} parent=1 // pred_check
      _
    $region47: #{tpu_custom_call.1} parent=1 // pred_check_branch
      %3220 = sbr.rel (0) target = $region49
    $region48: #{tpu_custom_call.1} parent=1 // pred_region
      %s3222 = ssub.s32 256, 256
      %3223 = vsyncadd [#allocation4], %s3222
      %s3224 = sshll.u32 [#allocation7], 4
      %s3225 = int_to_ptr.vmem [resolvable:$true] %s3224
      %3230 = dma.vmem_to_hbm [thread:$0]  %s3225, 256, %s9, [#allocation4], 128, 128, 8
    $region49: #{tpu_custom_call.1} parent=1 // pred_fallthru
      _
    // Predicated region
    $region50: #{tpu_custom_call.1} parent=1 // pred_check
      _
    $region51: #{tpu_custom_call.1} parent=1 // pred_check_branch
      %3232 = sbr.rel (0) target = $region53
    $region52: #{tpu_custom_call.1} parent=1 // pred_region
      %3233 = dma.done [#allocation4], 256
    $region53: #{tpu_custom_call.1} parent=1 // pred_fallthru
      _
    %3234 = vsyncpa [#allocation3], 1
    %3235 = vsyncpa [#allocation6], 1
    %3236 = vsyncpa [#allocation4], 1

</llo_original>
